<compile_context>
chip_gen: v7x
topology: tpu7x:2x2x1
jax: 0.10.0
libtpu: 0.0.40
codegen_flags: <defaults>
</compile_context>

<pallas_src>
import functools

import jax
import jax.numpy as jnp
from jax.experimental import pallas as pl
from jax.experimental.pallas import tpu as pltpu


# ---------------------------------------------------------------------------
# Fused forward kernel
# ---------------------------------------------------------------------------
def _cvae_forward_kernel(latent_dim, n_hidden, history_dim, state_dim, *refs):
    """Fused CVAE forward.

    refs layout (inputs):
      x, cond, eps, freqs, slopes(SMEM),
      We0_x, We0_h, be0,                 # encoder layer 0 (split over concat)
      (We_i, be_i) * n_hidden,           # encoder hidden layers
      WeL, beL,                          # encoder output layer
      Wd0_z, Wd0_c, Wd0_sin, Wd0_cos, bd0,   # decoder layer 0 (split)
      (Wd_i, bd_i) * n_hidden,           # decoder hidden layers
      WdL, bdL                           # decoder output layer
    refs layout (outputs): recon, mu, logvar
    """
    recon_ref, mu_ref, logvar_ref = refs[-3:]
    it = iter(refs[:-3])
    x_ref = next(it)
    cond_ref = next(it)
    eps_ref = next(it)
    freqs_ref = next(it)
    slopes_ref = next(it)

    f32 = jnp.float32

    def dot(a, w_ref):
        w = w_ref[...]                                    # bf16 weights
        return jnp.dot(a.astype(w.dtype), w, preferred_element_type=f32)

    def prelu(h, idx):
        a = slopes_ref[idx]                               # scalar from SMEM
        return jnp.where(h > 0, h, h * a)

    # ------------------------ encoder MLP ------------------------
    x = x_ref[...].astype(f32)                            # (bt, output_dim)
    cond = cond_ref[...].astype(f32)                      # (bt, cond_dim)
    sh = cond[:, :history_dim]                            # state history

    w_x, w_h, b = next(it), next(it), next(it)
    h = prelu(dot(x, w_x) + dot(sh, w_h) + b[...], 0)
    for li in range(n_hidden):
        w, b = next(it), next(it)
        h = prelu(dot(h, w) + b[...], 1 + li)
    w, b = next(it), next(it)
    enc = dot(h, w) + b[...]                              # (bt, 2*latent)

    mu = enc[:, :latent_dim]
    logvar = enc[:, latent_dim:]

    # ---------------------- reparameterize -----------------------
    z = mu + eps_ref[...].astype(f32) * jnp.exp(0.5 * logvar)

    # -------------------- decoder (MLPPosEmb) --------------------
    cdim = cond.shape[1]
    c_np = cond[:, history_dim - state_dim:cdim - 1]      # state/goal cond, no phase
    phase = cond[:, cdim - 1:]                            # (bt, 1) phase column
    e = phase * freqs_ref[...]                            # (bt, half_pe)
    sin_e = jnp.sin(e)
    cos_e = jnp.cos(e)

    w_z, w_c, w_s, w_co, b = next(it), next(it), next(it), next(it), next(it)
    h = (dot(z, w_z) + dot(c_np, w_c)
         + dot(sin_e, w_s) + dot(cos_e, w_co) + b[...])
    base = n_hidden + 1
    h = prelu(h, base)
    for li in range(n_hidden):
        w, b = next(it), next(it)
        h = prelu(dot(h, w) + b[...], base + 1 + li)
    w, b = next(it), next(it)
    recon = dot(h, w) + b[...]

    recon_ref[...] = recon.astype(recon_ref.dtype)
    mu_ref[...] = mu.astype(mu_ref.dtype)
    logvar_ref[...] = logvar.astype(logvar_ref.dtype)


# ---------------------------------------------------------------------------
# Parameter initialization (PyTorch-like shapes / bounds)
# ---------------------------------------------------------------------------
def _init_linear(key, in_dim, out_dim):
    kw, kb = jax.random.split(key)
    bound = 1.0 / (in_dim ** 0.5)
    w = jax.random.uniform(kw, (in_dim, out_dim), jnp.float32, -bound, bound)
    b = jax.random.uniform(kb, (1, out_dim), jnp.float32, -bound, bound)
    return w, b


def _init_mlp(key, input_dim, output_dim, n_hidden, latent_dim):
    # Matches MLP.__init__ with dropout=0.0 (identity) and batch_norm=False.
    keys = jax.random.split(key, n_hidden + 2)
    Ws, bs = [], []
    w, b = _init_linear(keys[0], input_dim, latent_dim)
    Ws.append(w); bs.append(b)
    for i in range(n_hidden):
        w, b = _init_linear(keys[1 + i], latent_dim, latent_dim)
        Ws.append(w); bs.append(b)
    w, b = _init_linear(keys[-1], latent_dim, output_dim)
    Ws.append(w); bs.append(b)
    slopes = [0.25] * (n_hidden + 1)      # nn.PReLU() default (num_parameters=1)
    return Ws, bs, slopes


def _pick_batch_tile(B):
    if B % 8 == 0:
        for t in (128, 64, 32, 16, 8):
            if B % t == 0:
                return t
    return B


# ---------------------------------------------------------------------------
# Model wrapper
# ---------------------------------------------------------------------------
class CVAE_MLP:
    def __init__(self, key, input_dim, output_dim, hidden_dim, latent_dim,
                 n_hidden, state_dim, history_length,
                 weight_dtype=jnp.bfloat16):
        self.state_dim = state_dim
        self.input_dim = input_dim
        self.output_dim = output_dim
        self.latent_dim = latent_dim
        self.hidden_dim = hidden_dim
        self.n_hidden = n_hidden
        self.history_dim = state_dim * history_length
        self.pose_embedding_dim = hidden_dim // 4
        self.half_pe = self.pose_embedding_dim // 2
        self.weight_dtype = weight_dtype

        # SinusoidalPosEmb frequencies: 1 / 0.001 ** (2*(k//2)/half)  (constant)
        k = jnp.arange(self.half_pe)
        self.freqs = (1.0 / (0.001 ** (2.0 * (k // 2).astype(jnp.float32)
                                       / self.half_pe))
                      ).reshape(1, self.half_pe).astype(jnp.float32)

        enc_in = output_dim + self.history_dim
        dec_in = latent_dim + input_dim + self.pose_embedding_dim - 1

        k_enc, k_dec = jax.random.split(key)
        enc_W, enc_b, enc_a = _init_mlp(k_enc, enc_in, 2 * latent_dim,
                                        n_hidden, hidden_dim)
        dec_W, dec_b, dec_a = _init_mlp(k_dec, dec_in, output_dim,
                                        n_hidden, hidden_dim)

        wd = weight_dtype
        params = []
        # Encoder layer 0: split W over concat([x, state_history]).
        W0 = enc_W[0]
        params += [W0[:output_dim].astype(wd), W0[output_dim:].astype(wd),
                   enc_b[0]]
        for i in range(n_hidden):
            params += [enc_W[1 + i].astype(wd), enc_b[1 + i]]
        params += [enc_W[-1].astype(wd), enc_b[-1]]

        # Decoder layer 0: split W over concat([z, cond_no_phase, sin, cos]).
        W0 = dec_W[0]
        o0 = latent_dim
        o1 = o0 + (input_dim - 1)
        o2 = o1 + self.half_pe
        params += [W0[:o0].astype(wd), W0[o0:o1].astype(wd),
                   W0[o1:o2].astype(wd), W0[o2:].astype(wd), dec_b[0]]
        for i in range(n_hidden):
            params += [dec_W[1 + i].astype(wd), dec_b[1 + i]]
        params += [dec_W[-1].astype(wd), dec_b[-1]]

        self.params = params
        # All PReLU slopes packed into one small 1-D SMEM-resident vector.
        self.slopes = jnp.asarray(enc_a + dec_a, jnp.float32)
        # Full (unsplit) f32 copies for the pure-JAX reference check.
        self._ref = (enc_W, enc_b, enc_a, dec_W, dec_b, dec_a)

    def forward(self, x, conditioning, eps):
        B = x.shape[0]
        cond_dim = conditioning.shape[1]
        assert cond_dim == self.history_dim - self.state_dim + self.input_dim
        bt = _pick_batch_tile(B)
        grid = (B // bt,)

        def data_spec(feat):
            return pl.BlockSpec((bt, feat), lambda i: (i, 0))

        def full_spec(arr):
            return pl.BlockSpec(arr.shape, lambda i: (0,) * arr.ndim)

        in_arrays = [x, conditioning, eps, self.freqs, self.slopes] + self.params
        in_specs = [data_spec(self.output_dim),
                    data_spec(cond_dim),
                    data_spec(self.latent_dim),
                    full_spec(self.freqs),
                    pl.BlockSpec(memory_space=pltpu.MemorySpace.SMEM)]
        in_specs += [full_spec(p) for p in self.params]

        out_shape = (
            jax.ShapeDtypeStruct((B, self.output_dim), jnp.float32),
            jax.ShapeDtypeStruct((B, self.latent_dim), jnp.float32),
            jax.ShapeDtypeStruct((B, self.latent_dim), jnp.float32),
        )
        out_specs = (data_spec(self.output_dim),
                     data_spec(self.latent_dim),
                     data_spec(self.latent_dim))

        kernel = functools.partial(_cvae_forward_kernel, self.latent_dim,
                                   self.n_hidden, self.history_dim,
                                   self.state_dim)
        recon, mu, logvar = pl.pallas_call(
            kernel,
            grid=grid,
            out_shape=out_shape,
            in_specs=in_specs,
            out_specs=out_specs,
            compiler_params=pltpu.CompilerParams(
                dimension_semantics=("parallel",)),
        )(*in_arrays)
        return recon, mu, logvar


# ---------------------------------------------------------------------------
# Pure-JAX reference (same math / same bf16 weight rounding) for sanity check
# ---------------------------------------------------------------------------
def _ref_forward(model, x, cond, eps):
    enc_W, enc_b, enc_a, dec_W, dec_b, dec_a = model._ref
    wd = model.weight_dtype

    def mlp(h, Ws, bs, slopes):
        for i, (W, b) in enumerate(zip(Ws, bs)):
            h = jnp.dot(h.astype(wd), W.astype(wd),
                        preferred_element_type=jnp.float32) + b
            if i < len(Ws) - 1:
                h = jnp.where(h > 0, h, h * slopes[i])
        return h

    sh = cond[:, :model.history_dim]
    enc = mlp(jnp.concatenate([x, sh], -1), enc_W, enc_b, enc_a)
    mu = enc[:, :model.latent_dim]
    logvar = enc[:, model.latent_dim:]
    z = mu + eps * jnp.exp(0.5 * logvar)
    sgc = cond[:, model.history_dim - model.state_dim:]
    d_in = jnp.concatenate([z, sgc], -1)
    phase = d_in[:, -1]
    e = phase[:, None] * model.freqs
    pe = jnp.concatenate([jnp.sin(e), jnp.cos(e)], -1)
    x_pe = jnp.concatenate([d_in[:, :-1], pe], -1)
    recon = mlp(x_pe, dec_W, dec_b, dec_a)
    return recon, mu, logvar


# ---------------------------------------------------------------------------
if __name__ == "__main__":
    key = jax.random.PRNGKey(0)
    k_param, k_x, k_c, k_eps = jax.random.split(key, 4)

    input_dim, output_dim, hidden_dim, latent_dim = 16, 8, 32, 8
    n_hidden, state_dim, history_length = 1, 4, 3

    model = CVAE_MLP(k_param, input_dim, output_dim, hidden_dim, latent_dim,
                     n_hidden, state_dim, history_length)

    B = 2
    cond_dim = model.history_dim - state_dim + input_dim   # 24
    x = jax.random.normal(k_x, (B, output_dim), jnp.float32)
    conditioning = jax.random.normal(k_c, (B, cond_dim), jnp.float32)
    eps = jax.random.normal(k_eps, (B, latent_dim), jnp.float32)

    recon, mu, logvar = model.forward(x, conditioning, eps)
    jax.block_until_ready((recon, mu, logvar))

    r_ref, mu_ref, lv_ref = _ref_forward(model, x, conditioning, eps)

    assert recon.shape == (B, output_dim)
    assert mu.shape == (B, latent_dim) and logvar.shape == (B, latent_dim)
    assert bool(jnp.all(jnp.isfinite(recon)))
    assert bool(jnp.all(jnp.isfinite(mu)))
    assert bool(jnp.all(jnp.isfinite(logvar)))
    assert bool(jnp.allclose(recon, r_ref, atol=2e-2, rtol=2e-2))
    assert bool(jnp.allclose(mu, mu_ref, atol=2e-2, rtol=2e-2))
    assert bool(jnp.allclose(logvar, lv_ref, atol=2e-2, rtol=2e-2))

    print("KERNEL_OK")
</pallas_src>

<mosaic_0001>
module attributes {stable_mosaic.version = 11 : i64} {
  func.func @_cvae_forward_kernel(%arg0: i32, %arg1: memref<2x8xf32, #tpu.memory_space<vmem>>, %arg2: memref<2x24xf32, #tpu.memory_space<vmem>>, %arg3: memref<2x8xf32, #tpu.memory_space<vmem>>, %arg4: memref<1x4xf32, #tpu.memory_space<vmem>>, %arg5: memref<4xf32, #tpu.memory_space<smem>>, %arg6: memref<8x32xbf16, #tpu.memory_space<vmem>>, %arg7: memref<12x32xbf16, #tpu.memory_space<vmem>>, %arg8: memref<1x32xf32, #tpu.memory_space<vmem>>, %arg9: memref<32x32xbf16, #tpu.memory_space<vmem>>, %arg10: memref<1x32xf32, #tpu.memory_space<vmem>>, %arg11: memref<32x16xbf16, #tpu.memory_space<vmem>>, %arg12: memref<1x16xf32, #tpu.memory_space<vmem>>, %arg13: memref<8x32xbf16, #tpu.memory_space<vmem>>, %arg14: memref<15x32xbf16, #tpu.memory_space<vmem>>, %arg15: memref<4x32xbf16, #tpu.memory_space<vmem>>, %arg16: memref<4x32xbf16, #tpu.memory_space<vmem>>, %arg17: memref<1x32xf32, #tpu.memory_space<vmem>>, %arg18: memref<32x32xbf16, #tpu.memory_space<vmem>>, %arg19: memref<1x32xf32, #tpu.memory_space<vmem>>, %arg20: memref<32x8xbf16, #tpu.memory_space<vmem>>, %arg21: memref<1x8xf32, #tpu.memory_space<vmem>>, %arg22: memref<2x8xf32, #tpu.memory_space<vmem>>, %arg23: memref<2x8xf32, #tpu.memory_space<vmem>>, %arg24: memref<2x8xf32, #tpu.memory_space<vmem>>) attributes {dimension_semantics = [#tpu.dimension_semantics<parallel>], iteration_bounds = array<i64: 1>, scalar_prefetch = 0 : i64, scratch_operands = 0 : i64, tpu.core_type = #tpu.core_type<tc>, window_params = [{transform_indices = @transform_0, window_bounds = array<i64: 2, 8>}, {transform_indices = @transform_1, window_bounds = array<i64: 2, 24>}, {transform_indices = @transform_2, window_bounds = array<i64: 2, 8>}, {pipeline_mode = #tpu.pipeline_mode<synchronous>, transform_indices = @transform_3, window_bounds = array<i64: 1, 4>}, {transform_indices = @transform_4, window_bounds = array<i64: 4>}, {pipeline_mode = #tpu.pipeline_mode<synchronous>, transform_indices = @transform_5, window_bounds = array<i64: 8, 32>}, {pipeline_mode = #tpu.pipeline_mode<synchronous>, transform_indices = @transform_6, window_bounds = array<i64: 12, 32>}, {pipeline_mode = #tpu.pipeline_mode<synchronous>, transform_indices = @transform_7, window_bounds = array<i64: 1, 32>}, {pipeline_mode = #tpu.pipeline_mode<synchronous>, transform_indices = @transform_8, window_bounds = array<i64: 32, 32>}, {pipeline_mode = #tpu.pipeline_mode<synchronous>, transform_indices = @transform_9, window_bounds = array<i64: 1, 32>}, {pipeline_mode = #tpu.pipeline_mode<synchronous>, transform_indices = @transform_10, window_bounds = array<i64: 32, 16>}, {pipeline_mode = #tpu.pipeline_mode<synchronous>, transform_indices = @transform_11, window_bounds = array<i64: 1, 16>}, {pipeline_mode = #tpu.pipeline_mode<synchronous>, transform_indices = @transform_12, window_bounds = array<i64: 8, 32>}, {pipeline_mode = #tpu.pipeline_mode<synchronous>, transform_indices = @transform_13, window_bounds = array<i64: 15, 32>}, {pipeline_mode = #tpu.pipeline_mode<synchronous>, transform_indices = @transform_14, window_bounds = array<i64: 4, 32>}, {pipeline_mode = #tpu.pipeline_mode<synchronous>, transform_indices = @transform_15, window_bounds = array<i64: 4, 32>}, {pipeline_mode = #tpu.pipeline_mode<synchronous>, transform_indices = @transform_16, window_bounds = array<i64: 1, 32>}, {pipeline_mode = #tpu.pipeline_mode<synchronous>, transform_indices = @transform_17, window_bounds = array<i64: 32, 32>}, {pipeline_mode = #tpu.pipeline_mode<synchronous>, transform_indices = @transform_18, window_bounds = array<i64: 1, 32>}, {pipeline_mode = #tpu.pipeline_mode<synchronous>, transform_indices = @transform_19, window_bounds = array<i64: 32, 8>}, {pipeline_mode = #tpu.pipeline_mode<synchronous>, transform_indices = @transform_20, window_bounds = array<i64: 1, 8>}, {transform_indices = @transform_21, window_bounds = array<i64: 2, 8>}, {transform_indices = @transform_22, window_bounds = array<i64: 2, 8>}, {transform_indices = @transform_23, window_bounds = array<i64: 2, 8>}]} {
    %c0 = arith.constant 0 : index
    %c0_0 = arith.constant 0 : index
    %0 = vector.load %arg1[%c0, %c0_0] : memref<2x8xf32, #tpu.memory_space<vmem>>, vector<2x8xf32>
    %c0_1 = arith.constant 0 : index
    %c0_2 = arith.constant 0 : index
    %1 = vector.load %arg2[%c0_1, %c0_2] : memref<2x24xf32, #tpu.memory_space<vmem>>, vector<2x24xf32>
    %2 = vector.extract_strided_slice %1 {offsets = [0, 0], sizes = [2, 12], strides = [1, 1]} : vector<2x24xf32> to vector<2x12xf32>
    %c0_3 = arith.constant 0 : index
    %c0_4 = arith.constant 0 : index
    %3 = vector.load %arg6[%c0_3, %c0_4] : memref<8x32xbf16, #tpu.memory_space<vmem>>, vector<8x32xbf16>
    %4 = arith.truncf %0 : vector<2x8xf32> to vector<2x8xbf16>
    %cst = arith.constant dense<0.000000e+00> : vector<2x32xf32>
    %5 = tpu.matmul %4, %3, %cst {dimension_numbers = #tpu.dot_dimension_numbers<[1], [0], [0], [1], [0, 0, 1, 1], [], []>} : vector<2x8xbf16>, vector<8x32xbf16>, vector<2x32xf32> -> vector<2x32xf32>
    %c0_5 = arith.constant 0 : index
    %c0_6 = arith.constant 0 : index
    %6 = vector.load %arg7[%c0_5, %c0_6] : memref<12x32xbf16, #tpu.memory_space<vmem>>, vector<12x32xbf16>
    %7 = arith.truncf %2 : vector<2x12xf32> to vector<2x12xbf16>
    %cst_7 = arith.constant dense<0.000000e+00> : vector<2x32xf32>
    %8 = tpu.matmul %7, %6, %cst_7 {dimension_numbers = #tpu.dot_dimension_numbers<[1], [0], [0], [1], [0, 0, 1, 1], [], []>} : vector<2x12xbf16>, vector<12x32xbf16>, vector<2x32xf32> -> vector<2x32xf32>
    %9 = arith.addf %5, %8 : vector<2x32xf32>
    %c0_8 = arith.constant 0 : index
    %c0_9 = arith.constant 0 : index
    %10 = vector.load %arg8[%c0_8, %c0_9] : memref<1x32xf32, #tpu.memory_space<vmem>>, vector<1x32xf32>
    %11 = vector.broadcast %10 : vector<1x32xf32> to vector<2x32xf32>
    %12 = arith.addf %9, %11 : vector<2x32xf32>
    %c0_10 = arith.constant 0 : index
    %13 = memref.load %arg5[%c0_10] : memref<4xf32, #tpu.memory_space<smem>>
    %cst_11 = arith.constant 0.000000e+00 : f32
    %14 = vector.broadcast %cst_11 : f32 to vector<2x32xf32>
    %15 = arith.cmpf ogt, %12, %14 : vector<2x32xf32>
    %16 = vector.broadcast %13 : f32 to vector<2x32xf32>
    %17 = arith.mulf %12, %16 : vector<2x32xf32>
    %18 = arith.select %15, %12, %17 : vector<2x32xi1>, vector<2x32xf32>
    %c0_12 = arith.constant 0 : index
    %c0_13 = arith.constant 0 : index
    %19 = vector.load %arg9[%c0_12, %c0_13] : memref<32x32xbf16, #tpu.memory_space<vmem>>, vector<32x32xbf16>
    %20 = arith.truncf %18 : vector<2x32xf32> to vector<2x32xbf16>
    %cst_14 = arith.constant dense<0.000000e+00> : vector<2x32xf32>
    %21 = tpu.matmul %20, %19, %cst_14 {dimension_numbers = #tpu.dot_dimension_numbers<[1], [0], [0], [1], [0, 0, 1, 1], [], []>} : vector<2x32xbf16>, vector<32x32xbf16>, vector<2x32xf32> -> vector<2x32xf32>
    %c0_15 = arith.constant 0 : index
    %c0_16 = arith.constant 0 : index
    %22 = vector.load %arg10[%c0_15, %c0_16] : memref<1x32xf32, #tpu.memory_space<vmem>>, vector<1x32xf32>
    %23 = vector.broadcast %22 : vector<1x32xf32> to vector<2x32xf32>
    %24 = arith.addf %21, %23 : vector<2x32xf32>
    %c1 = arith.constant 1 : index
    %25 = memref.load %arg5[%c1] : memref<4xf32, #tpu.memory_space<smem>>
    %cst_17 = arith.constant 0.000000e+00 : f32
    %26 = vector.broadcast %cst_17 : f32 to vector<2x32xf32>
    %27 = arith.cmpf ogt, %24, %26 : vector<2x32xf32>
    %28 = vector.broadcast %25 : f32 to vector<2x32xf32>
    %29 = arith.mulf %24, %28 : vector<2x32xf32>
    %30 = arith.select %27, %24, %29 : vector<2x32xi1>, vector<2x32xf32>
    %c0_18 = arith.constant 0 : index
    %c0_19 = arith.constant 0 : index
    %31 = vector.load %arg11[%c0_18, %c0_19] : memref<32x16xbf16, #tpu.memory_space<vmem>>, vector<32x16xbf16>
    %32 = arith.truncf %30 : vector<2x32xf32> to vector<2x32xbf16>
    %cst_20 = arith.constant dense<0.000000e+00> : vector<2x16xf32>
    %33 = tpu.matmul %32, %31, %cst_20 {dimension_numbers = #tpu.dot_dimension_numbers<[1], [0], [0], [1], [0, 0, 1, 1], [], []>} : vector<2x32xbf16>, vector<32x16xbf16>, vector<2x16xf32> -> vector<2x16xf32>
    %c0_21 = arith.constant 0 : index
    %c0_22 = arith.constant 0 : index
    %34 = vector.load %arg12[%c0_21, %c0_22] : memref<1x16xf32, #tpu.memory_space<vmem>>, vector<1x16xf32>
    %35 = vector.broadcast %34 : vector<1x16xf32> to vector<2x16xf32>
    %36 = arith.addf %33, %35 : vector<2x16xf32>
    %37 = vector.extract_strided_slice %36 {offsets = [0, 0], sizes = [2, 8], strides = [1, 1]} : vector<2x16xf32> to vector<2x8xf32>
    %38 = vector.extract_strided_slice %36 {offsets = [0, 8], sizes = [2, 8], strides = [1, 1]} : vector<2x16xf32> to vector<2x8xf32>
    %c0_23 = arith.constant 0 : index
    %c0_24 = arith.constant 0 : index
    %39 = vector.load %arg3[%c0_23, %c0_24] : memref<2x8xf32, #tpu.memory_space<vmem>>, vector<2x8xf32>
    %cst_25 = arith.constant 5.000000e-01 : f32
    %40 = vector.broadcast %cst_25 : f32 to vector<2x8xf32>
    %41 = arith.mulf %40, %38 : vector<2x8xf32>
    %42 = math.exp %41 : vector<2x8xf32>
    %43 = arith.mulf %39, %42 : vector<2x8xf32>
    %44 = arith.addf %37, %43 : vector<2x8xf32>
    %45 = vector.extract_strided_slice %1 {offsets = [0, 8], sizes = [2, 15], strides = [1, 1]} : vector<2x24xf32> to vector<2x15xf32>
    %46 = vector.extract_strided_slice %1 {offsets = [0, 23], sizes = [2, 1], strides = [1, 1]} : vector<2x24xf32> to vector<2x1xf32>
    %c0_26 = arith.constant 0 : index
    %c0_27 = arith.constant 0 : index
    %47 = vector.load %arg4[%c0_26, %c0_27] : memref<1x4xf32, #tpu.memory_space<vmem>>, vector<1x4xf32>
    %48 = vector.broadcast %46 : vector<2x1xf32> to vector<2x4xf32>
    %49 = vector.broadcast %47 : vector<1x4xf32> to vector<2x4xf32>
    %50 = arith.mulf %48, %49 : vector<2x4xf32>
    %51 = math.sin %50 : vector<2x4xf32>
    %52 = math.cos %50 : vector<2x4xf32>
    %c0_28 = arith.constant 0 : index
    %c0_29 = arith.constant 0 : index
    %53 = vector.load %arg13[%c0_28, %c0_29] : memref<8x32xbf16, #tpu.memory_space<vmem>>, vector<8x32xbf16>
    %54 = arith.truncf %44 : vector<2x8xf32> to vector<2x8xbf16>
    %cst_30 = arith.constant dense<0.000000e+00> : vector<2x32xf32>
    %55 = tpu.matmul %54, %53, %cst_30 {dimension_numbers = #tpu.dot_dimension_numbers<[1], [0], [0], [1], [0, 0, 1, 1], [], []>} : vector<2x8xbf16>, vector<8x32xbf16>, vector<2x32xf32> -> vector<2x32xf32>
    %c0_31 = arith.constant 0 : index
    %c0_32 = arith.constant 0 : index
    %56 = vector.load %arg14[%c0_31, %c0_32] : memref<15x32xbf16, #tpu.memory_space<vmem>>, vector<15x32xbf16>
    %57 = arith.truncf %45 : vector<2x15xf32> to vector<2x15xbf16>
    %cst_33 = arith.constant dense<0.000000e+00> : vector<2x32xf32>
    %58 = tpu.matmul %57, %56, %cst_33 {dimension_numbers = #tpu.dot_dimension_numbers<[1], [0], [0], [1], [0, 0, 1, 1], [], []>} : vector<2x15xbf16>, vector<15x32xbf16>, vector<2x32xf32> -> vector<2x32xf32>
    %59 = arith.addf %55, %58 : vector<2x32xf32>
    %c0_34 = arith.constant 0 : index
    %c0_35 = arith.constant 0 : index
    %60 = vector.load %arg15[%c0_34, %c0_35] : memref<4x32xbf16, #tpu.memory_space<vmem>>, vector<4x32xbf16>
    %61 = arith.truncf %51 : vector<2x4xf32> to vector<2x4xbf16>
    %cst_36 = arith.constant dense<0.000000e+00> : vector<2x32xf32>
    %62 = tpu.matmul %61, %60, %cst_36 {dimension_numbers = #tpu.dot_dimension_numbers<[1], [0], [0], [1], [0, 0, 1, 1], [], []>} : vector<2x4xbf16>, vector<4x32xbf16>, vector<2x32xf32> -> vector<2x32xf32>
    %63 = arith.addf %59, %62 : vector<2x32xf32>
    %c0_37 = arith.constant 0 : index
    %c0_38 = arith.constant 0 : index
    %64 = vector.load %arg16[%c0_37, %c0_38] : memref<4x32xbf16, #tpu.memory_space<vmem>>, vector<4x32xbf16>
    %65 = arith.truncf %52 : vector<2x4xf32> to vector<2x4xbf16>
    %cst_39 = arith.constant dense<0.000000e+00> : vector<2x32xf32>
    %66 = tpu.matmul %65, %64, %cst_39 {dimension_numbers = #tpu.dot_dimension_numbers<[1], [0], [0], [1], [0, 0, 1, 1], [], []>} : vector<2x4xbf16>, vector<4x32xbf16>, vector<2x32xf32> -> vector<2x32xf32>
    %67 = arith.addf %63, %66 : vector<2x32xf32>
    %c0_40 = arith.constant 0 : index
    %c0_41 = arith.constant 0 : index
    %68 = vector.load %arg17[%c0_40, %c0_41] : memref<1x32xf32, #tpu.memory_space<vmem>>, vector<1x32xf32>
    %69 = vector.broadcast %68 : vector<1x32xf32> to vector<2x32xf32>
    %70 = arith.addf %67, %69 : vector<2x32xf32>
    %c2 = arith.constant 2 : index
    %71 = memref.load %arg5[%c2] : memref<4xf32, #tpu.memory_space<smem>>
    %cst_42 = arith.constant 0.000000e+00 : f32
    %72 = vector.broadcast %cst_42 : f32 to vector<2x32xf32>
    %73 = arith.cmpf ogt, %70, %72 : vector<2x32xf32>
    %74 = vector.broadcast %71 : f32 to vector<2x32xf32>
    %75 = arith.mulf %70, %74 : vector<2x32xf32>
    %76 = arith.select %73, %70, %75 : vector<2x32xi1>, vector<2x32xf32>
    %c0_43 = arith.constant 0 : index
    %c0_44 = arith.constant 0 : index
    %77 = vector.load %arg18[%c0_43, %c0_44] : memref<32x32xbf16, #tpu.memory_space<vmem>>, vector<32x32xbf16>
    %78 = arith.truncf %76 : vector<2x32xf32> to vector<2x32xbf16>
    %cst_45 = arith.constant dense<0.000000e+00> : vector<2x32xf32>
    %79 = tpu.matmul %78, %77, %cst_45 {dimension_numbers = #tpu.dot_dimension_numbers<[1], [0], [0], [1], [0, 0, 1, 1], [], []>} : vector<2x32xbf16>, vector<32x32xbf16>, vector<2x32xf32> -> vector<2x32xf32>
    %c0_46 = arith.constant 0 : index
    %c0_47 = arith.constant 0 : index
    %80 = vector.load %arg19[%c0_46, %c0_47] : memref<1x32xf32, #tpu.memory_space<vmem>>, vector<1x32xf32>
    %81 = vector.broadcast %80 : vector<1x32xf32> to vector<2x32xf32>
    %82 = arith.addf %79, %81 : vector<2x32xf32>
    %c3 = arith.constant 3 : index
    %83 = memref.load %arg5[%c3] : memref<4xf32, #tpu.memory_space<smem>>
    %cst_48 = arith.constant 0.000000e+00 : f32
    %84 = vector.broadcast %cst_48 : f32 to vector<2x32xf32>
    %85 = arith.cmpf ogt, %82, %84 : vector<2x32xf32>
    %86 = vector.broadcast %83 : f32 to vector<2x32xf32>
    %87 = arith.mulf %82, %86 : vector<2x32xf32>
    %88 = arith.select %85, %82, %87 : vector<2x32xi1>, vector<2x32xf32>
    %c0_49 = arith.constant 0 : index
    %c0_50 = arith.constant 0 : index
    %89 = vector.load %arg20[%c0_49, %c0_50] : memref<32x8xbf16, #tpu.memory_space<vmem>>, vector<32x8xbf16>
    %90 = arith.truncf %88 : vector<2x32xf32> to vector<2x32xbf16>
    %cst_51 = arith.constant dense<0.000000e+00> : vector<2x8xf32>
    %91 = tpu.matmul %90, %89, %cst_51 {dimension_numbers = #tpu.dot_dimension_numbers<[1], [0], [0], [1], [0, 0, 1, 1], [], []>} : vector<2x32xbf16>, vector<32x8xbf16>, vector<2x8xf32> -> vector<2x8xf32>
    %c0_52 = arith.constant 0 : index
    %c0_53 = arith.constant 0 : index
    %92 = vector.load %arg21[%c0_52, %c0_53] : memref<1x8xf32, #tpu.memory_space<vmem>>, vector<1x8xf32>
    %93 = vector.broadcast %92 : vector<1x8xf32> to vector<2x8xf32>
    %94 = arith.addf %91, %93 : vector<2x8xf32>
    %c0_54 = arith.constant 0 : index
    %c0_55 = arith.constant 0 : index
    %95 = vector.load %arg22[%c0_54, %c0_55] : memref<2x8xf32, #tpu.memory_space<vmem>>, vector<2x8xf32>
    tpu.vector_store %arg22[%c0_54, %c0_55], %94 {strides = array<i32>} : memref<2x8xf32, #tpu.memory_space<vmem>>, vector<2x8xf32>,
    %c0_56 = arith.constant 0 : index
    %c0_57 = arith.constant 0 : index
    %96 = vector.load %arg23[%c0_56, %c0_57] : memref<2x8xf32, #tpu.memory_space<vmem>>, vector<2x8xf32>
    tpu.vector_store %arg23[%c0_56, %c0_57], %37 {strides = array<i32>} : memref<2x8xf32, #tpu.memory_space<vmem>>, vector<2x8xf32>,
    %c0_58 = arith.constant 0 : index
    %c0_59 = arith.constant 0 : index
    %97 = vector.load %arg24[%c0_58, %c0_59] : memref<2x8xf32, #tpu.memory_space<vmem>>, vector<2x8xf32>
    tpu.vector_store %arg24[%c0_58, %c0_59], %38 {strides = array<i32>} : memref<2x8xf32, #tpu.memory_space<vmem>>, vector<2x8xf32>,
    return
  }
  func.func @transform_0(%arg0: i32) -> (i32, i32) {
    %c0_i32 = arith.constant 0 : i32
    %c0_i32_0 = arith.constant 0 : i32
    return %arg0, %c0_i32 : i32, i32
  }
  func.func @transform_1(%arg0: i32) -> (i32, i32) {
    %c0_i32 = arith.constant 0 : i32
    %c0_i32_0 = arith.constant 0 : i32
    return %arg0, %c0_i32 : i32, i32
  }
  func.func @transform_2(%arg0: i32) -> (i32, i32) {
    %c0_i32 = arith.constant 0 : i32
    %c0_i32_0 = arith.constant 0 : i32
    return %arg0, %c0_i32 : i32, i32
  }
  func.func @transform_3(%arg0: i32) -> (i32, i32) {
    %c0_i32 = arith.constant 0 : i32
    %c0_i32_0 = arith.constant 0 : i32
    %c0_i32_1 = arith.constant 0 : i32
    return %c0_i32, %c0_i32_0 : i32, i32
  }
  func.func @transform_4(%arg0: i32) -> i32 {
    %c0_i32 = arith.constant 0 : i32
    %c0_i32_0 = arith.constant 0 : i32
    return %c0_i32 : i32
  }
  func.func @transform_5(%arg0: i32) -> (i32, i32) {
    %c0_i32 = arith.constant 0 : i32
    %c0_i32_0 = arith.constant 0 : i32
    %c0_i32_1 = arith.constant 0 : i32
    return %c0_i32, %c0_i32_0 : i32, i32
  }
  func.func @transform_6(%arg0: i32) -> (i32, i32) {
    %c0_i32 = arith.constant 0 : i32
    %c0_i32_0 = arith.constant 0 : i32
    %c0_i32_1 = arith.constant 0 : i32
    return %c0_i32, %c0_i32_0 : i32, i32
  }
  func.func @transform_7(%arg0: i32) -> (i32, i32) {
    %c0_i32 = arith.constant 0 : i32
    %c0_i32_0 = arith.constant 0 : i32
    %c0_i32_1 = arith.constant 0 : i32
    return %c0_i32, %c0_i32_0 : i32, i32
  }
  func.func @transform_8(%arg0: i32) -> (i32, i32) {
    %c0_i32 = arith.constant 0 : i32
    %c0_i32_0 = arith.constant 0 : i32
    %c0_i32_1 = arith.constant 0 : i32
    return %c0_i32, %c0_i32_0 : i32, i32
  }
  func.func @transform_9(%arg0: i32) -> (i32, i32) {
    %c0_i32 = arith.constant 0 : i32
    %c0_i32_0 = arith.constant 0 : i32
    %c0_i32_1 = arith.constant 0 : i32
    return %c0_i32, %c0_i32_0 : i32, i32
  }
  func.func @transform_10(%arg0: i32) -> (i32, i32) {
    %c0_i32 = arith.constant 0 : i32
    %c0_i32_0 = arith.constant 0 : i32
    %c0_i32_1 = arith.constant 0 : i32
    return %c0_i32, %c0_i32_0 : i32, i32
  }
  func.func @transform_11(%arg0: i32) -> (i32, i32) {
    %c0_i32 = arith.constant 0 : i32
    %c0_i32_0 = arith.constant 0 : i32
    %c0_i32_1 = arith.constant 0 : i32
    return %c0_i32, %c0_i32_0 : i32, i32
  }
  func.func @transform_12(%arg0: i32) -> (i32, i32) {
    %c0_i32 = arith.constant 0 : i32
    %c0_i32_0 = arith.constant 0 : i32
    %c0_i32_1 = arith.constant 0 : i32
    return %c0_i32, %c0_i32_0 : i32, i32
  }
  func.func @transform_13(%arg0: i32) -> (i32, i32) {
    %c0_i32 = arith.constant 0 : i32
    %c0_i32_0 = arith.constant 0 : i32
    %c0_i32_1 = arith.constant 0 : i32
    return %c0_i32, %c0_i32_0 : i32, i32
  }
  func.func @transform_14(%arg0: i32) -> (i32, i32) {
    %c0_i32 = arith.constant 0 : i32
    %c0_i32_0 = arith.constant 0 : i32
    %c0_i32_1 = arith.constant 0 : i32
    return %c0_i32, %c0_i32_0 : i32, i32
  }
  func.func @transform_15(%arg0: i32) -> (i32, i32) {
    %c0_i32 = arith.constant 0 : i32
    %c0_i32_0 = arith.constant 0 : i32
    %c0_i32_1 = arith.constant 0 : i32
    return %c0_i32, %c0_i32_0 : i32, i32
  }
  func.func @transform_16(%arg0: i32) -> (i32, i32) {
    %c0_i32 = arith.constant 0 : i32
    %c0_i32_0 = arith.constant 0 : i32
    %c0_i32_1 = arith.constant 0 : i32
    return %c0_i32, %c0_i32_0 : i32, i32
  }
  func.func @transform_17(%arg0: i32) -> (i32, i32) {
    %c0_i32 = arith.constant 0 : i32
    %c0_i32_0 = arith.constant 0 : i32
    %c0_i32_1 = arith.constant 0 : i32
    return %c0_i32, %c0_i32_0 : i32, i32
  }
  func.func @transform_18(%arg0: i32) -> (i32, i32) {
    %c0_i32 = arith.constant 0 : i32
    %c0_i32_0 = arith.constant 0 : i32
    %c0_i32_1 = arith.constant 0 : i32
    return %c0_i32, %c0_i32_0 : i32, i32
  }
  func.func @transform_19(%arg0: i32) -> (i32, i32) {
    %c0_i32 = arith.constant 0 : i32
    %c0_i32_0 = arith.constant 0 : i32
    %c0_i32_1 = arith.constant 0 : i32
    return %c0_i32, %c0_i32_0 : i32, i32
  }
  func.func @transform_20(%arg0: i32) -> (i32, i32) {
    %c0_i32 = arith.constant 0 : i32
    %c0_i32_0 = arith.constant 0 : i32
    %c0_i32_1 = arith.constant 0 : i32
    return %c0_i32, %c0_i32_0 : i32, i32
  }
  func.func @transform_21(%arg0: i32) -> (i32, i32) {
    %c0_i32 = arith.constant 0 : i32
    %c0_i32_0 = arith.constant 0 : i32
    return %arg0, %c0_i32 : i32, i32
  }
  func.func @transform_22(%arg0: i32) -> (i32, i32) {
    %c0_i32 = arith.constant 0 : i32
    %c0_i32_0 = arith.constant 0 : i32
    return %arg0, %c0_i32 : i32, i32
  }
  func.func @transform_23(%arg0: i32) -> (i32, i32) {
    %c0_i32 = arith.constant 0 : i32
    %c0_i32_0 = arith.constant 0 : i32
    return %arg0, %c0_i32 : i32, i32
  }
}

</mosaic_0001>

<llo_original>
// kernel: tpu_custom_call.1
$region0: #{tpu_custom_call.1}
  #allocation0 [shape = 'u32[]', space=smem, size = 0x4, offset = 0x4, fixed_abs, tag = 'smem constant byte address 0x4 - core index']
  #allocation1 [shape = 'u32[144,128]{1,0:T(1,128)}', space=vmem, size = 0x12000, scoped, tag = 'internal scratch']
  %s0 = inlined_call_operand.vmem [shape: f32[2,8], index: 0, kind: input, shape index: {}]
  %s1 = inlined_call_operand.hbm [shape: f32[2,24], index: 1, kind: input, shape index: {}]
  %s2 = inlined_call_operand.hbm [shape: f32[2,8], index: 2, kind: input, shape index: {}]
  %s3 = inlined_call_operand.hbm [shape: f32[1,4], index: 3, kind: input, shape index: {}]
  %s4 = inlined_call_operand.hbm [shape: f32[4], index: 4, kind: input, shape index: {}]
  %s5 = inlined_call_operand.hbm [shape: bf16[8,32], index: 5, kind: input, shape index: {}]
  %s6 = inlined_call_operand.vmem [shape: bf16[12,32], index: 6, kind: input, shape index: {}]
  %s7 = inlined_call_operand.hbm [shape: f32[1,32], index: 7, kind: input, shape index: {}]
  %s8 = inlined_call_operand.vmem [shape: bf16[32,32], index: 8, kind: input, shape index: {}]
  %s9 = inlined_call_operand.vmem [shape: f32[1,32], index: 9, kind: input, shape index: {}]
  %s10 = inlined_call_operand.vmem [shape: bf16[32,16], index: 10, kind: input, shape index: {}]
  %s11 = inlined_call_operand.vmem [shape: f32[1,16], index: 11, kind: input, shape index: {}]
  %s12 = inlined_call_operand.vmem [shape: bf16[8,32], index: 12, kind: input, shape index: {}]
  %s13 = inlined_call_operand.vmem [shape: bf16[15,32], index: 13, kind: input, shape index: {}]
  %s14 = inlined_call_operand.vmem [shape: bf16[4,32], index: 14, kind: input, shape index: {}]
  %s15 = inlined_call_operand.vmem [shape: bf16[4,32], index: 15, kind: input, shape index: {}]
  %s16 = inlined_call_operand.vmem [shape: f32[1,32], index: 16, kind: input, shape index: {}]
  %s17 = inlined_call_operand.vmem [shape: bf16[32,32], index: 17, kind: input, shape index: {}]
  %s18 = inlined_call_operand.vmem [shape: f32[1,32], index: 18, kind: input, shape index: {}]
  %s19 = inlined_call_operand.vmem [shape: bf16[32,8], index: 19, kind: input, shape index: {}]
  %s20 = inlined_call_operand.vmem [shape: f32[1,8], index: 20, kind: input, shape index: {}]
  %s21 = inlined_call_operand.hbm [shape: f32[2,8], index: 21, kind: output, shape index: {0}]
  %s22 = inlined_call_operand.hbm [shape: f32[2,8], index: 22, kind: output, shape index: {1}]
  %s23 = inlined_call_operand.hbm [shape: f32[2,8], index: 23, kind: output, shape index: {2}]
  %24 = xla_tuple %s21, %s22, %s23
  %s25 = sld [smem:[#allocation0]]
  $region134: #{tpu_custom_call.1} parent=0
    _
  %s27 = ssub.s32 1, %s25
  %s28 = scalar_select 0, %s27, %s25
  $region1: #{tpu_custom_call.1} parent=0
    #allocation2 [shape = 'u8[1024]{0}', space=vmem, size = 0x400, scoped, tag = 'input window, operand 1, single buffered']
    #allocation3 [shape = 's32[1]{0}', space=sflag, size = 0x4, scoped, tag = 'scoped memory for tpu_custom_call.1']
    #allocation4 [shape = 's32[1]{0}', space=sflag, size = 0x4, scoped, tag = 'scoped memory for tpu_custom_call.1']
    #allocation5 [shape = 's32[1]{0}', space=sflag, size = 0x4, scoped, tag = 'scoped memory for tpu_custom_call.1']
    #allocation6 [shape = 'u8[1024]{0}', space=vmem, size = 0x400, scoped, tag = 'input window, operand 2, single buffered']
    #allocation7 [shape = 's32[1]{0}', space=sflag, size = 0x4, scoped, tag = 'scoped memory for tpu_custom_call.1']
    #allocation8 [shape = 'u8[512]{0}', space=vmem, size = 0x400, scoped, tag = 'input window, operand 3, single buffered']
    #allocation9 [shape = 'u8[512]{0}', space=smem, size = 0x200, scoped, tag = 'input window, operand 4, single buffered']
    #allocation10 [shape = 'u8[2048]{0}', space=vmem, size = 0x800, scoped, tag = 'input window, operand 5, single buffered']
    #allocation11 [shape = 's32[1]{0}', space=sflag, size = 0x4, scoped, tag = 'scoped memory for tpu_custom_call.1']
    #allocation12 [shape = 'u8[512]{0}', space=vmem, size = 0x400, scoped, tag = 'input window, operand 7, single buffered']
    #allocation13 [shape = 'u8[1024]{0}', space=vmem, size = 0x400, scoped, tag = 'output window, operand 0, single buffered']
    #allocation14 [shape = 'u8[1024]{0}', space=vmem, size = 0x400, scoped, tag = 'output window, operand 1, single buffered']
    #allocation15 [shape = 's32[1]{0}', space=sflag, size = 0x4, scoped, tag = 'scoped memory for tpu_custom_call.1']
    #allocation16 [shape = 'u8[1024]{0}', space=vmem, size = 0x400, scoped, tag = 'output window, operand 2, single buffered']
    %29 = vsyncpa [#allocation3], 0
    %30 = vsyncpa [#allocation7], 0
    %31 = vsyncpa [#allocation5], 0
    %32 = vsyncpa [#allocation11], 0
    %33 = vsyncpa [#allocation4], 0
    %34 = vsyncpa [#allocation15], 0
    // Predicated region
    $region2: #{tpu_custom_call.1} parent=1 // pred_check
      _
    $region3: #{tpu_custom_call.1} parent=1 // pred_check_branch
      %36 = sbr.rel (0) target = $region5
    $region4: #{tpu_custom_call.1} parent=1 // pred_region
      _
    $region5: #{tpu_custom_call.1} parent=1 // pred_fallthru
      _
    // Predicated region
    $region6: #{tpu_custom_call.1} parent=1 // pred_check
      _
    $region7: #{tpu_custom_call.1} parent=1 // pred_check_branch
      %38 = sbr.rel (0) target = $region9
    $region8: #{tpu_custom_call.1} parent=1 // pred_region
      %s40 = ssub.s32 32, 32
      %41 = vsyncadd [#allocation3], %s40
      %s43 = sshll.u32 [#allocation2], 4
      %s44 = int_to_ptr.vmem [resolvable:$true] %s43
      %46 = dma.hbm_to_vmem [thread:$0]  %s1, 32, %s44, [#allocation3]
    $region9: #{tpu_custom_call.1} parent=1 // pred_fallthru
      _
    // Predicated region
    $region10: #{tpu_custom_call.1} parent=1 // pred_check
      _
    $region11: #{tpu_custom_call.1} parent=1 // pred_check_branch
      %48 = sbr.rel (0) target = $region13
    $region12: #{tpu_custom_call.1} parent=1 // pred_region
      %s50 = ssub.s32 32, 32
      %51 = vsyncadd [#allocation7], %s50
      %s53 = sshll.u32 [#allocation6], 4
      %s54 = int_to_ptr.vmem [resolvable:$true] %s53
      %56 = dma.hbm_to_vmem [thread:$0]  %s2, 32, %s54, [#allocation7]
    $region13: #{tpu_custom_call.1} parent=1 // pred_fallthru
      _
    // Predicated region
    $region14: #{tpu_custom_call.1} parent=1 // pred_check
      _
    $region15: #{tpu_custom_call.1} parent=1 // pred_check_branch
      %58 = sbr.rel (0) target = $region17
    $region16: #{tpu_custom_call.1} parent=1 // pred_region
      %s60 = ssub.s32 16, 16
      %61 = vsyncadd [#allocation7], %s60
      %s63 = sshll.u32 [#allocation8], 4
      %s64 = int_to_ptr.vmem [resolvable:$true] %s63
      %66 = dma.hbm_to_vmem [thread:$0]  %s3, 16, %s64, [#allocation7]
    $region17: #{tpu_custom_call.1} parent=1 // pred_fallthru
      _
    // Predicated region
    $region18: #{tpu_custom_call.1} parent=1 // pred_check
      _
    $region19: #{tpu_custom_call.1} parent=1 // pred_check_branch
      %68 = sbr.rel (0) target = $region21
    $region20: #{tpu_custom_call.1} parent=1 // pred_region
      %s70 = ssub.s32 16, 16
      %71 = vsyncadd [#allocation5], %s70
      %74 = dma.hbm_to_smem %s4, 16, [#allocation9], [#allocation5]
    $region21: #{tpu_custom_call.1} parent=1 // pred_fallthru
      _
    // Predicated region
    $region22: #{tpu_custom_call.1} parent=1 // pred_check
      _
    $region23: #{tpu_custom_call.1} parent=1 // pred_check_branch
      %76 = sbr.rel (0) target = $region25
    $region24: #{tpu_custom_call.1} parent=1 // pred_region
      %s78 = ssub.s32 64, 64
      %79 = vsyncadd [#allocation11], %s78
      %s81 = sshll.u32 [#allocation10], 4
      %s82 = int_to_ptr.vmem [resolvable:$true] %s81
      %84 = dma.hbm_to_vmem [thread:$0]  %s5, 64, %s82, [#allocation11]
    $region25: #{tpu_custom_call.1} parent=1 // pred_fallthru
      _
    // Predicated region
    $region26: #{tpu_custom_call.1} parent=1 // pred_check
      _
    $region27: #{tpu_custom_call.1} parent=1 // pred_check_branch
      %86 = sbr.rel (0) target = $region29
    $region28: #{tpu_custom_call.1} parent=1 // pred_region
      _
    $region29: #{tpu_custom_call.1} parent=1 // pred_fallthru
      _
    // Predicated region
    $region30: #{tpu_custom_call.1} parent=1 // pred_check
      _
    $region31: #{tpu_custom_call.1} parent=1 // pred_check_branch
      %88 = sbr.rel (0) target = $region33
    $region32: #{tpu_custom_call.1} parent=1 // pred_region
      %s90 = ssub.s32 16, 16
      %91 = vsyncadd [#allocation11], %s90
      %s93 = sshll.u32 [#allocation12], 4
      %s94 = int_to_ptr.vmem [resolvable:$true] %s93
      %96 = dma.hbm_to_vmem [thread:$0]  %s7, 16, %s94, [#allocation11]
    $region33: #{tpu_custom_call.1} parent=1 // pred_fallthru
      _
    // Predicated region
    $region34: #{tpu_custom_call.1} parent=1 // pred_check
      _
    $region35: #{tpu_custom_call.1} parent=1 // pred_check_branch
      %98 = sbr.rel (0) target = $region37
    $region36: #{tpu_custom_call.1} parent=1 // pred_region
      _
    $region37: #{tpu_custom_call.1} parent=1 // pred_fallthru
      _
    // Predicated region
    $region38: #{tpu_custom_call.1} parent=1 // pred_check
      _
    $region39: #{tpu_custom_call.1} parent=1 // pred_check_branch
      %100 = sbr.rel (0) target = $region41
    $region40: #{tpu_custom_call.1} parent=1 // pred_region
      _
    $region41: #{tpu_custom_call.1} parent=1 // pred_fallthru
      _
    // Predicated region
    $region42: #{tpu_custom_call.1} parent=1 // pred_check
      _
    $region43: #{tpu_custom_call.1} parent=1 // pred_check_branch
      %102 = sbr.rel (0) target = $region45
    $region44: #{tpu_custom_call.1} parent=1 // pred_region
      _
    $region45: #{tpu_custom_call.1} parent=1 // pred_fallthru
      _
    // Predicated region
    $region46: #{tpu_custom_call.1} parent=1 // pred_check
      _
    $region47: #{tpu_custom_call.1} parent=1 // pred_check_branch
      %104 = sbr.rel (0) target = $region49
    $region48: #{tpu_custom_call.1} parent=1 // pred_region
      _
    $region49: #{tpu_custom_call.1} parent=1 // pred_fallthru
      _
    // Predicated region
    $region50: #{tpu_custom_call.1} parent=1 // pred_check
      _
    $region51: #{tpu_custom_call.1} parent=1 // pred_check_branch
      %106 = sbr.rel (0) target = $region53
    $region52: #{tpu_custom_call.1} parent=1 // pred_region
      _
    $region53: #{tpu_custom_call.1} parent=1 // pred_fallthru
      _
    // Predicated region
    $region54: #{tpu_custom_call.1} parent=1 // pred_check
      _
    $region55: #{tpu_custom_call.1} parent=1 // pred_check_branch
      %108 = sbr.rel (0) target = $region57
    $region56: #{tpu_custom_call.1} parent=1 // pred_region
      _
    $region57: #{tpu_custom_call.1} parent=1 // pred_fallthru
      _
    // Predicated region
    $region58: #{tpu_custom_call.1} parent=1 // pred_check
      _
    $region59: #{tpu_custom_call.1} parent=1 // pred_check_branch
      %110 = sbr.rel (0) target = $region61
    $region60: #{tpu_custom_call.1} parent=1 // pred_region
      _
    $region61: #{tpu_custom_call.1} parent=1 // pred_fallthru
      _
    // Predicated region
    $region62: #{tpu_custom_call.1} parent=1 // pred_check
      _
    $region63: #{tpu_custom_call.1} parent=1 // pred_check_branch
      %112 = sbr.rel (0) target = $region65
    $region64: #{tpu_custom_call.1} parent=1 // pred_region
      _
    $region65: #{tpu_custom_call.1} parent=1 // pred_fallthru
      _
    // Predicated region
    $region66: #{tpu_custom_call.1} parent=1 // pred_check
      _
    $region67: #{tpu_custom_call.1} parent=1 // pred_check_branch
      %114 = sbr.rel (0) target = $region69
    $region68: #{tpu_custom_call.1} parent=1 // pred_region
      _
    $region69: #{tpu_custom_call.1} parent=1 // pred_fallthru
      _
    // Predicated region
    $region70: #{tpu_custom_call.1} parent=1 // pred_check
      _
    $region71: #{tpu_custom_call.1} parent=1 // pred_check_branch
      %116 = sbr.rel (0) target = $region73
    $region72: #{tpu_custom_call.1} parent=1 // pred_region
      _
    $region73: #{tpu_custom_call.1} parent=1 // pred_fallthru
      _
    // Predicated region
    $region74: #{tpu_custom_call.1} parent=1 // pred_check
      _
    $region75: #{tpu_custom_call.1} parent=1 // pred_check_branch
      %118 = sbr.rel (0) target = $region77
    $region76: #{tpu_custom_call.1} parent=1 // pred_region
      _
    $region77: #{tpu_custom_call.1} parent=1 // pred_fallthru
      _
    // Predicated region
    $region78: #{tpu_custom_call.1} parent=1 // pred_check
      _
    $region79: #{tpu_custom_call.1} parent=1 // pred_check_branch
      %120 = sbr.rel (0) target = $region81
    $region80: #{tpu_custom_call.1} parent=1 // pred_region
      _
    $region81: #{tpu_custom_call.1} parent=1 // pred_fallthru
      _
    // Predicated region
    $region82: #{tpu_custom_call.1} parent=1 // pred_check
      _
    $region83: #{tpu_custom_call.1} parent=1 // pred_check_branch
      %122 = sbr.rel (0) target = $region85
    $region84: #{tpu_custom_call.1} parent=1 // pred_region
      _
    $region85: #{tpu_custom_call.1} parent=1 // pred_fallthru
      _
    // Predicated region
    $region86: #{tpu_custom_call.1} parent=1 // pred_check
      _
    $region87: #{tpu_custom_call.1} parent=1 // pred_check_branch
      %124 = sbr.rel (0) target = $region89
    $region88: #{tpu_custom_call.1} parent=1 // pred_region
      %125 = dma.done [#allocation3], 32
    $region89: #{tpu_custom_call.1} parent=1 // pred_fallthru
      _
    // Predicated region
    $region90: #{tpu_custom_call.1} parent=1 // pred_check
      _
    $region91: #{tpu_custom_call.1} parent=1 // pred_check_branch
      %127 = sbr.rel (0) target = $region93
    $region92: #{tpu_custom_call.1} parent=1 // pred_region
      %128 = dma.done [#allocation7], 32
    $region93: #{tpu_custom_call.1} parent=1 // pred_fallthru
      _
    // Predicated region
    $region94: #{tpu_custom_call.1} parent=1 // pred_check
      _
    $region95: #{tpu_custom_call.1} parent=1 // pred_check_branch
      %130 = sbr.rel (0) target = $region97
    $region96: #{tpu_custom_call.1} parent=1 // pred_region
      %131 = dma.done [#allocation7], 16
    $region97: #{tpu_custom_call.1} parent=1 // pred_fallthru
      _
    // Predicated region
    $region98: #{tpu_custom_call.1} parent=1 // pred_check
      _
    $region99: #{tpu_custom_call.1} parent=1 // pred_check_branch
      %133 = sbr.rel (0) target = $region101
    $region100: #{tpu_custom_call.1} parent=1 // pred_region
      %134 = dma.done [#allocation5], 16
    $region101: #{tpu_custom_call.1} parent=1 // pred_fallthru
      _
    // Predicated region
    $region102: #{tpu_custom_call.1} parent=1 // pred_check
      _
    $region103: #{tpu_custom_call.1} parent=1 // pred_check_branch
      %136 = sbr.rel (0) target = $region105
    $region104: #{tpu_custom_call.1} parent=1 // pred_region
      %137 = dma.done [#allocation11], 64
    $region105: #{tpu_custom_call.1} parent=1 // pred_fallthru
      _
    // Predicated region
    $region106: #{tpu_custom_call.1} parent=1 // pred_check
      _
    $region107: #{tpu_custom_call.1} parent=1 // pred_check_branch
      %139 = sbr.rel (0) target = $region109
    $region108: #{tpu_custom_call.1} parent=1 // pred_region
      %140 = dma.done [#allocation11], 16
    $region109: #{tpu_custom_call.1} parent=1 // pred_fallthru
      _
    %141 = sfence
    %v143 = vld [vmem:[%s0] sm:$0x3]
    %v144 = vld [vmem:[#allocation2] sm:$0x3]
    %v145 = vld [vmem:[#allocation10] sm:$0xf]
    %v146 = vpack.c.bf16 %v143, %v143
    %v147 = vld [vmem:[%s6] sm:$0xf]
    %v148 = vld [vmem:[%s6 + $0x4] sm:$0x3]
    %v149 = vpack.c.bf16 %v144, %v144
    %v152 = vunpack.c.l.b16 %v147
    %v153 = vunpack.c.l.b16 %v148
    %v154 = vpack.c.b16 %v153, %v152
    %vm155 = vcmask 97280
    %v157 = vsel %vm155, %v149, 0
    %vm159 = vcmask 1045504
    %v161 = vsel %vm159, %v154, 0
    %163 = vmatprep.subr.bf16.mxu0 0
    %164 = vmatpush1.bf16.msra.mxu0 %v161
    %165 = vmatprep.subr.bf16.mxu0 0
    %166 = vmatpush1.bf16.msra.mxu0 0
    %167 = vmatprep.subr.bf16.mxu0 0
    %168 = vmatpush1.bf16.msra.mxu0 0
    %169 = vmatprep.subr.bf16.mxu0 0
    %170 = vmatpush1.bf16.msra.mxu0 0
    %171 = vmatprep.subr.bf16.mxu0 0
    %172 = vmatpush1.bf16.msra.mxu0 0
    %173 = vmatprep.subr.bf16.mxu0 0
    %174 = vmatpush1.bf16.msra.mxu0 0
    %175 = vmatprep.subr.bf16.mxu0 0
    %176 = vmatpush1.bf16.msra.mxu0 0
    %177 = vmatprep.subr.bf16.mxu0 0
    %178 = vmatpush1.bf16.msra.mxu0 0
    %179 = vmatprep.subr.bf16.mxu0 0
    %180 = vmatpush1.bf16.msra.mxu0 0
    %181 = vmatprep.subr.bf16.mxu0 0
    %182 = vmatpush1.bf16.msra.mxu0 0
    %183 = vmatprep.subr.bf16.mxu0 0
    %184 = vmatpush1.bf16.msra.mxu0 0
    %185 = vmatprep.subr.bf16.mxu0 0
    %186 = vmatpush1.bf16.msra.mxu0 0
    %187 = vmatprep.subr.bf16.mxu0 0
    %188 = vmatpush1.bf16.msra.mxu0 0
    %189 = vmatprep.subr.bf16.mxu0 0
    %190 = vmatpush1.bf16.msra.mxu0 0
    %191 = vmatprep.subr.bf16.mxu0 0
    %192 = vmatpush1.bf16.msra.mxu0 0
    %193 = vmatprep.subr.bf16.mxu0 0
    %194 = vmatpush1.bf16.msra.mxu0 0
    %195 = vmatprep.mubr.bf16.mxu0 0
    %196 = vmatmul.mubr.bf16.gmra.mrb[0].mxu0 %v157
    %v197 = vpop.f32.mrb[0].mxu0
    %v198 = vadd.f32 0.0, %v197
    %v199 = vpop.f32.mrb[0].mxu0
    %v200 = vpop.f32.mrb[0].mxu0
    %v201 = vpop.f32.mrb[0].mxu0
    %202 = vdwg.mxu0
    %vm203 = vcmask 64512
    %v205 = vsel %vm203, %v146, 0
    %vm207 = vcmask 1043456
    %v209 = vsel %vm207, %v145, 0
    %211 = vmatprep.subr.bf16.mxu0 0
    %212 = vmatpush1.bf16.msra.mxu0 %v209
    %213 = vmatprep.subr.bf16.mxu0 0
    %214 = vmatpush1.bf16.msra.mxu0 0
    %215 = vmatprep.subr.bf16.mxu0 0
    %216 = vmatpush1.bf16.msra.mxu0 0
    %217 = vmatprep.subr.bf16.mxu0 0
    %218 = vmatpush1.bf16.msra.mxu0 0
    %219 = vmatprep.subr.bf16.mxu0 0
    %220 = vmatpush1.bf16.msra.mxu0 0
    %221 = vmatprep.subr.bf16.mxu0 0
    %222 = vmatpush1.bf16.msra.mxu0 0
    %223 = vmatprep.subr.bf16.mxu0 0
    %224 = vmatpush1.bf16.msra.mxu0 0
    %225 = vmatprep.subr.bf16.mxu0 0
    %226 = vmatpush1.bf16.msra.mxu0 0
    %227 = vmatprep.subr.bf16.mxu0 0
    %228 = vmatpush1.bf16.msra.mxu0 0
    %229 = vmatprep.subr.bf16.mxu0 0
    %230 = vmatpush1.bf16.msra.mxu0 0
    %231 = vmatprep.subr.bf16.mxu0 0
    %232 = vmatpush1.bf16.msra.mxu0 0
    %233 = vmatprep.subr.bf16.mxu0 0
    %234 = vmatpush1.bf16.msra.mxu0 0
    %235 = vmatprep.subr.bf16.mxu0 0
    %236 = vmatpush1.bf16.msra.mxu0 0
    %237 = vmatprep.subr.bf16.mxu0 0
    %238 = vmatpush1.bf16.msra.mxu0 0
    %239 = vmatprep.subr.bf16.mxu0 0
    %240 = vmatpush1.bf16.msra.mxu0 0
    %241 = vmatprep.subr.bf16.mxu0 0
    %242 = vmatpush1.bf16.msra.mxu0 0
    %243 = vmatprep.mubr.bf16.mxu0 0
    %244 = vmatmul.mubr.bf16.gmra.mrb[0].mxu0 %v205
    %v245 = vpop.f32.mrb[0].mxu0
    %v246 = vadd.f32 %v198, %v245
    %v247 = vpop.f32.mrb[0].mxu0
    %v248 = vpop.f32.mrb[0].mxu0
    %v249 = vpop.f32.mrb[0].mxu0
    %250 = vdwg.mxu0
    %v251 = vld [vmem:[#allocation12] sm:$0x1]
    %v253 = vlaneseq
    %v254 = vshrl.u32 %v253, 7
    %v255 = vsub.s32 0, %v254
    %v256 = vrot.slane %v251, %v255
    %v258 = vadd.f32 %v246, %v256
    %s259 = sld [smem:[#allocation9]]
    %vm260 = vcmp.gt.f32.partialorder %v258, 0.0
    %v261 = vstv %s259
    %v262 = vmul.f32 %v258, %v261
    %v263 = vsel %vm260, %v258, %v262
    %v264 = vld [vmem:[%s8] sm:$0xf]
    %v265 = vld [vmem:[%s8 + $0x4] sm:$0xf]
    %v266 = vld [vmem:[%s8 + $0x8] sm:$0xf]
    %v267 = vld [vmem:[%s8 + $0xc] sm:$0xf]
    %v268 = vpack.c.bf16 %v263, %v263
    %v269 = vld [vmem:[%s9] sm:$0x1]
    %v271 = vlaneseq
    %v272 = vshrl.u32 %v271, 7
    %v273 = vsub.s32 0, %v272
    %v274 = vrot.slane %v269, %v273
    %v280 = vunpack.c.l.b16 %v264
    %v281 = vunpack.c.l.b16 %v265
    %v282 = vunpack.c.l.b16 %v266
    %v283 = vunpack.c.l.b16 %v267
    %v284 = vpack.c.b16 %v281, %v280
    %v285 = vpack.c.b16 %v283, %v282
    %vm288 = vcmask 261120
    %v290 = vsel %vm288, %v268, 0
    %292 = vmatprep.subr.bf16.mxu0 0
    %293 = vmatpush1.bf16.msra.mxu0 %v284
    %294 = vmatprep.subr.bf16.mxu0 0
    %295 = vmatpush1.bf16.msra.mxu0 %v285
    %296 = vmatprep.subr.bf16.mxu0 0
    %297 = vmatpush1.bf16.msra.mxu0 0
    %298 = vmatprep.subr.bf16.mxu0 0
    %299 = vmatpush1.bf16.msra.mxu0 0
    %300 = vmatprep.subr.bf16.mxu0 0
    %301 = vmatpush1.bf16.msra.mxu0 0
    %302 = vmatprep.subr.bf16.mxu0 0
    %303 = vmatpush1.bf16.msra.mxu0 0
    %304 = vmatprep.subr.bf16.mxu0 0
    %305 = vmatpush1.bf16.msra.mxu0 0
    %306 = vmatprep.subr.bf16.mxu0 0
    %307 = vmatpush1.bf16.msra.mxu0 0
    %308 = vmatprep.subr.bf16.mxu0 0
    %309 = vmatpush1.bf16.msra.mxu0 0
    %310 = vmatprep.subr.bf16.mxu0 0
    %311 = vmatpush1.bf16.msra.mxu0 0
    %312 = vmatprep.subr.bf16.mxu0 0
    %313 = vmatpush1.bf16.msra.mxu0 0
    %314 = vmatprep.subr.bf16.mxu0 0
    %315 = vmatpush1.bf16.msra.mxu0 0
    %316 = vmatprep.subr.bf16.mxu0 0
    %317 = vmatpush1.bf16.msra.mxu0 0
    %318 = vmatprep.subr.bf16.mxu0 0
    %319 = vmatpush1.bf16.msra.mxu0 0
    %320 = vmatprep.subr.bf16.mxu0 0
    %321 = vmatpush1.bf16.msra.mxu0 0
    %322 = vmatprep.subr.bf16.mxu0 0
    %323 = vmatpush1.bf16.msra.mxu0 0
    %324 = vmatprep.mubr.bf16.mxu0 0
    %325 = vmatmul.mubr.bf16.gmra.mrb[0].mxu0 %v290
    %v326 = vpop.f32.mrb[0].mxu0
    %v327 = vadd.f32 %v274, %v326
    %v328 = vpop.f32.mrb[0].mxu0
    %v329 = vpop.f32.mrb[0].mxu0
    %v330 = vpop.f32.mrb[0].mxu0
    %331 = vdwg.mxu0
    %s332 = sld [smem:[#allocation9 + $0x1]]
    %vm333 = vcmp.gt.f32.partialorder %v327, 0.0
    %v334 = vstv %s332
    %v335 = vmul.f32 %v327, %v334
    %v336 = vsel %vm333, %v327, %v335
    %v337 = vld [vmem:[%s10] sm:$0xf]
    %v338 = vld [vmem:[%s10 + $0x4] sm:$0xf]
    %v339 = vld [vmem:[%s10 + $0x8] sm:$0xf]
    %v340 = vld [vmem:[%s10 + $0xc] sm:$0xf]
    %v341 = vpack.c.bf16 %v336, %v336
    %v342 = vld [vmem:[%s11] sm:$0x1]
    %v344 = vlaneseq
    %v345 = vshrl.u32 %v344, 7
    %v346 = vsub.s32 0, %v345
    %v347 = vrot.slane %v342, %v346
    %v353 = vunpack.c.l.b16 %v337
    %v354 = vunpack.c.l.b16 %v338
    %v355 = vunpack.c.l.b16 %v339
    %v356 = vunpack.c.l.b16 %v340
    %v357 = vpack.c.b16 %v354, %v353
    %v358 = vpack.c.b16 %v356, %v355
    %v362 = vsel %vm288, %v341, 0
    %364 = vmatprep.subr.bf16.mxu0 0
    %365 = vmatpush1.bf16.msra.mxu0 %v357
    %366 = vmatprep.subr.bf16.mxu0 0
    %367 = vmatpush1.bf16.msra.mxu0 %v358
    %368 = vmatprep.subr.bf16.mxu0 0
    %369 = vmatpush1.bf16.msra.mxu0 0
    %370 = vmatprep.subr.bf16.mxu0 0
    %371 = vmatpush1.bf16.msra.mxu0 0
    %372 = vmatprep.subr.bf16.mxu0 0
    %373 = vmatpush1.bf16.msra.mxu0 0
    %374 = vmatprep.subr.bf16.mxu0 0
    %375 = vmatpush1.bf16.msra.mxu0 0
    %376 = vmatprep.subr.bf16.mxu0 0
    %377 = vmatpush1.bf16.msra.mxu0 0
    %378 = vmatprep.subr.bf16.mxu0 0
    %379 = vmatpush1.bf16.msra.mxu0 0
    %380 = vmatprep.subr.bf16.mxu0 0
    %381 = vmatpush1.bf16.msra.mxu0 0
    %382 = vmatprep.subr.bf16.mxu0 0
    %383 = vmatpush1.bf16.msra.mxu0 0
    %384 = vmatprep.subr.bf16.mxu0 0
    %385 = vmatpush1.bf16.msra.mxu0 0
    %386 = vmatprep.subr.bf16.mxu0 0
    %387 = vmatpush1.bf16.msra.mxu0 0
    %388 = vmatprep.subr.bf16.mxu0 0
    %389 = vmatpush1.bf16.msra.mxu0 0
    %390 = vmatprep.subr.bf16.mxu0 0
    %391 = vmatpush1.bf16.msra.mxu0 0
    %392 = vmatprep.subr.bf16.mxu0 0
    %393 = vmatpush1.bf16.msra.mxu0 0
    %394 = vmatprep.subr.bf16.mxu0 0
    %395 = vmatpush1.bf16.msra.mxu0 0
    %396 = vmatprep.mubr.bf16.mxu0 0
    %397 = vmatmul.mubr.bf16.gmra.mrb[0].mxu0 %v362
    %v398 = vpop.f32.mrb[0].mxu0
    %v399 = vadd.f32 %v347, %v398
    %v400 = vpop.f32.mrb[0].mxu0
    %v401 = vpop.f32.mrb[0].mxu0
    %v402 = vpop.f32.mrb[0].mxu0
    %403 = vdwg.mxu0
    %v404 = vld [vmem:[#allocation6] sm:$0x3]
    %v405 = vmul.f32 %v399, 0.5
    %v406 = vmul.f32 %v405, 1.442695
    %v407 = vpow.pop %v406
    %409 = vrot.lane.b32.xlu0 %v407, 120
    %v410 = vpop.permute.xlu0 %409
    %v412 = vmul.f32 %v404, %v410
    %v413 = vadd.f32 %v399, %v412
    %v414 = vld [vmem:[#allocation8] sm:$0x1]
    %416 = vset.pattern.permute.xlu0 23
    %417 = vperm.xlu0 %416, %v144
    %v418 = vpop.permute.xlu0 %417
    %v421 = vlaneseq
    %v422 = vshrl.u32 %v421, 7
    %v423 = vsub.s32 0, %v422
    %v424 = vrot.slane %v414, %v423
    %v426 = vmul.f32 %v418, %v424
    %v427 = vand.u32 2147483647, %v426
    %vm428 = vcmp.le.f32.partialorder %v427, 0.7853982
    %vm429 = vcmp.lt.s32.totalorder %v426, 0
    %v430 = vand.u32 %v426, 2139095040
    %v431 = vshrl.u32 %v430, 23
    %v432 = vsub.s32 %v431, 127
    %v433 = vand.u32 2147483647, %v426
    %v434 = vand.u32 %v433, 8388607
    %v435 = vor.u32 %v434, 8388608
    %v436 = vsub.s32 0, %v435
    %v437 = vadd.s32 %v432, 1
    %vm438 = vcmp.gt.s32.totalorder %v437, 0
    %v439 = vsel %vm438, %v437, 0
    %v440 = vshrl.u32 %v439, 5
    %v441 = vand.u32 %v439, 31
    %v442 = vsub.s32 32, %v441
    %v443 = vshrl.u32 683565275, %v442
    %v444 = vshll.u32 683565275, %v441
    %v445 = vshrl.u32 2475754826, %v442
    %v446 = vor.u32 %v444, %v445
    %v447 = vshll.u32 2475754826, %v441
    %v448 = vshrl.u32 2131351028, %v442
    %v449 = vor.u32 %v447, %v448
    %v450 = vshll.u32 2131351028, %v441
    %v451 = vshrl.u32 2102212464, %v442
    %v452 = vor.u32 %v450, %v451
    %v453 = vshll.u32 2102212464, %v441
    %v454 = vshrl.u32 920167782, %v442
    %v455 = vor.u32 %v453, %v454
    %v456 = vshll.u32 920167782, %v441
    %v457 = vshrl.u32 1326507024, %v442
    %v458 = vor.u32 %v456, %v457
    %vm459 = vcmp.lt.s32.totalorder %v440, 1
    %vm460 = vcmp.lt.s32.totalorder %v440, 2
    %vm461 = vcmp.lt.s32.totalorder %v440, 3
    %vm462 = vcmp.lt.s32.totalorder %v440, 4
    %v463 = vsel %vm459, %v443, %v446
    %v464 = vsel %vm462, %v452, 2102212464
    %v465 = vsel %vm461, %v449, %v464
    %v466 = vsel %vm460, %v463, %v465
    %v467 = vsel %vm459, %v446, %v449
    %v468 = vsel %vm462, %v455, 920167782
    %v469 = vsel %vm461, %v452, %v468
    %v470 = vsel %vm460, %v467, %v469
    %v471 = vsel %vm459, %v449, %v452
    %v472 = vsel %vm462, %v458, 1326507024
    %v473 = vsel %vm461, %v455, %v472
    %v474 = vsel %vm460, %v471, %v473
    %v475 = vshll.u32 %v435, 8
    %v476 = vmul.u32.u64.compose %v475, %v474
    %v477 = vextract.low.u32 %v476
    %v478 = vextract.high.u32 %v476
    %v479 = vmul.u32.u64.compose %v475, %v470
    %v480 = vextract.low.u32 %v479
    %v481 = vextract.high.u32 %v479
    %v482 = vmul.u32 %v475, %v466
    %v483 = vadd.s32 %v478, %v480
    %vm484 = vc.u32 %v478, %v480
    %v485 = vadd.s32 %v481, 1
    %v486 = vsel %vm484, %v485, %v481
    %v487 = vadd.s32 %v482, %v486
    %v488 = vadd.s32 %v487, 536870912
    %v489 = vshrl.u32 %v488, 30
    %v490 = vshll.u32 %v489, 30
    %v491 = vsub.s32 %v487, %v490
    %vm492 = vcmp.lt.s32.totalorder %v491, 0
    %v493 = vsub.s32 0, %v491
    %v494 = vsel %vm492, %v493, %v491
    %v495 = vclz %v494
    %v496 = vsub.s32 %v495, 2
    %vm497 = vcmp.gt.s32.totalorder 0, %v496
    %v498 = vsel %vm497, 0, %v496
    %v499 = vsub.s32 32, %v498
    %v500 = vshll.u32 %v491, %v498
    %v501 = vshrl.u32 %v483, %v499
    %v502 = vor.u32 %v500, %v501
    %v503 = vsub.s32 4294967266, %v498
    %v504 = vadd.s32 %v503, 127
    %v505 = vshll.u32 %v504, 23
    %v506 = vor.u32 4788187, %v505
    %v507 = vand.u32 2147483647, %v506
    %v509 = vcvt.s32.f32 %v502
    %v510 = vmul.f32 %v509, %v507
    %v511 = vxor.u32 %v510, 2147483648
    %v512 = vsel %vm429, %v511, %v510
    %v513 = vsub.s32 4, %v489
    %v514 = vsel %vm429, %v513, %v489
    %v515 = vsel %vm428, %v426, %v512
    %v516 = vsel %vm428, 0, %v514
    %v517 = vcosq.f32.pop %v515
    %v518 = vsinq.f32.pop %v515
    %vm519 = vweird.f32 %v426
    %v520 = vadd.s32 %v516, 3
    %v521 = vand.u32 %v520, 3
    %vm522 = vcmp.lt.s32.totalorder %v521, 2
    %vm523 = vcmp.eq.s32.totalorder %v521, 0
    %v524 = vxor.u32 %v518, 2147483648
    %v525 = vsel %vm523, %v517, %v524
    %vm526 = vcmp.eq.s32.totalorder %v521, 2
    %v527 = vxor.u32 %v517, 2147483648
    %v528 = vsel %vm526, %v527, %v518
    %v529 = vsel %vm522, %v525, %v528
    %v530 = vsel %vm519, nan, %v529
    %v531 = vand.u32 2147483647, %v426
    %vm532 = vcmp.le.f32.partialorder %v531, 0.7853982
    %vm533 = vcmp.lt.s32.totalorder %v426, 0
    %v534 = vand.u32 %v426, 2139095040
    %v535 = vshrl.u32 %v534, 23
    %v536 = vsub.s32 %v535, 127
    %v537 = vand.u32 2147483647, %v426
    %v538 = vand.u32 %v537, 8388607
    %v539 = vor.u32 %v538, 8388608
    %v540 = vsub.s32 0, %v539
    %v541 = vadd.s32 %v536, 1
    %vm542 = vcmp.gt.s32.totalorder %v541, 0
    %v543 = vsel %vm542, %v541, 0
    %v544 = vshrl.u32 %v543, 5
    %v545 = vand.u32 %v543, 31
    %v546 = vsub.s32 32, %v545
    %v547 = vshrl.u32 683565275, %v546
    %v548 = vshll.u32 683565275, %v545
    %v549 = vshrl.u32 2475754826, %v546
    %v550 = vor.u32 %v548, %v549
    %v551 = vshll.u32 2475754826, %v545
    %v552 = vshrl.u32 2131351028, %v546
    %v553 = vor.u32 %v551, %v552
    %v554 = vshll.u32 2131351028, %v545
    %v555 = vshrl.u32 2102212464, %v546
    %v556 = vor.u32 %v554, %v555
    %v557 = vshll.u32 2102212464, %v545
    %v558 = vshrl.u32 920167782, %v546
    %v559 = vor.u32 %v557, %v558
    %v560 = vshll.u32 920167782, %v545
    %v561 = vshrl.u32 1326507024, %v546
    %v562 = vor.u32 %v560, %v561
    %vm563 = vcmp.lt.s32.totalorder %v544, 1
    %vm564 = vcmp.lt.s32.totalorder %v544, 2
    %vm565 = vcmp.lt.s32.totalorder %v544, 3
    %vm566 = vcmp.lt.s32.totalorder %v544, 4
    %v567 = vsel %vm563, %v547, %v550
    %v568 = vsel %vm566, %v556, 2102212464
    %v569 = vsel %vm565, %v553, %v568
    %v570 = vsel %vm564, %v567, %v569
    %v571 = vsel %vm563, %v550, %v553
    %v572 = vsel %vm566, %v559, 920167782
    %v573 = vsel %vm565, %v556, %v572
    %v574 = vsel %vm564, %v571, %v573
    %v575 = vsel %vm563, %v553, %v556
    %v576 = vsel %vm566, %v562, 1326507024
    %v577 = vsel %vm565, %v559, %v576
    %v578 = vsel %vm564, %v575, %v577
    %v579 = vshll.u32 %v539, 8
    %v580 = vmul.u32.u64.compose %v579, %v578
    %v581 = vextract.low.u32 %v580
    %v582 = vextract.high.u32 %v580
    %v583 = vmul.u32.u64.compose %v579, %v574
    %v584 = vextract.low.u32 %v583
    %v585 = vextract.high.u32 %v583
    %v586 = vmul.u32 %v579, %v570
    %v587 = vadd.s32 %v582, %v584
    %vm588 = vc.u32 %v582, %v584
    %v589 = vadd.s32 %v585, 1
    %v590 = vsel %vm588, %v589, %v585
    %v591 = vadd.s32 %v586, %v590
    %v592 = vadd.s32 %v591, 536870912
    %v593 = vshrl.u32 %v592, 30
    %v594 = vshll.u32 %v593, 30
    %v595 = vsub.s32 %v591, %v594
    %vm596 = vcmp.lt.s32.totalorder %v595, 0
    %v597 = vsub.s32 0, %v595
    %v598 = vsel %vm596, %v597, %v595
    %v599 = vclz %v598
    %v600 = vsub.s32 %v599, 2
    %vm601 = vcmp.gt.s32.totalorder 0, %v600
    %v602 = vsel %vm601, 0, %v600
    %v603 = vsub.s32 32, %v602
    %v604 = vshll.u32 %v595, %v602
    %v605 = vshrl.u32 %v587, %v603
    %v606 = vor.u32 %v604, %v605
    %v607 = vsub.s32 4294967266, %v602
    %v608 = vadd.s32 %v607, 127
    %v609 = vshll.u32 %v608, 23
    %v610 = vor.u32 4788187, %v609
    %v611 = vand.u32 2147483647, %v610
    %v613 = vcvt.s32.f32 %v606
    %v614 = vmul.f32 %v613, %v611
    %v615 = vxor.u32 %v614, 2147483648
    %v616 = vsel %vm533, %v615, %v614
    %v617 = vsub.s32 4, %v593
    %v618 = vsel %vm533, %v617, %v593
    %v619 = vsel %vm532, %v426, %v616
    %v620 = vsel %vm532, 0, %v618
    %v621 = vcosq.f32.pop %v619
    %v622 = vsinq.f32.pop %v619
    %vm623 = vweird.f32 %v426
    %v624 = vand.u32 %v620, 3
    %vm625 = vcmp.lt.s32.totalorder %v624, 2
    %vm626 = vcmp.eq.s32.totalorder %v624, 0
    %v627 = vxor.u32 %v622, 2147483648
    %v628 = vsel %vm626, %v621, %v627
    %vm629 = vcmp.eq.s32.totalorder %v624, 2
    %v630 = vxor.u32 %v621, 2147483648
    %v631 = vsel %vm629, %v630, %v622
    %v632 = vsel %vm625, %v628, %v631
    %v633 = vsel %vm623, nan, %v632
    %v634 = vld [vmem:[%s12] sm:$0xf]
    %v635 = vpack.c.bf16 %v413, %v413
    %v636 = vld [vmem:[%s13] sm:$0xf]
    %v637 = vld [vmem:[%s13 + $0x4] sm:$0xf]
    %639 = vrot.lane.b32.xlu0 %v149, 120
    %v640 = vpop.permute.xlu0 %639
    %v643 = vunpack.c.l.b16 %v636
    %v644 = vunpack.c.l.b16 %v637
    %v645 = vpack.c.b16 %v644, %v643
    %vm646 = vcmask 121856
    %v648 = vsel %vm646, %v640, 0
    %vm650 = vcmask 1046528
    %vm651 = vcmask 1047552
    %v652 = vsel %vm650, 4294967295, 65535
    %v653 = vsel %vm651, %v652, 0
    %v655 = vand.u32 %v645, %v653
    %657 = vmatprep.subr.bf16.mxu0 0
    %658 = vmatpush1.bf16.msra.mxu0 %v655
    %659 = vmatprep.subr.bf16.mxu0 0
    %660 = vmatpush1.bf16.msra.mxu0 0
    %661 = vmatprep.subr.bf16.mxu0 0
    %662 = vmatpush1.bf16.msra.mxu0 0
    %663 = vmatprep.subr.bf16.mxu0 0
    %664 = vmatpush1.bf16.msra.mxu0 0
    %665 = vmatprep.subr.bf16.mxu0 0
    %666 = vmatpush1.bf16.msra.mxu0 0
    %667 = vmatprep.subr.bf16.mxu0 0
    %668 = vmatpush1.bf16.msra.mxu0 0
    %669 = vmatprep.subr.bf16.mxu0 0
    %670 = vmatpush1.bf16.msra.mxu0 0
    %671 = vmatprep.subr.bf16.mxu0 0
    %672 = vmatpush1.bf16.msra.mxu0 0
    %673 = vmatprep.subr.bf16.mxu0 0
    %674 = vmatpush1.bf16.msra.mxu0 0
    %675 = vmatprep.subr.bf16.mxu0 0
    %676 = vmatpush1.bf16.msra.mxu0 0
    %677 = vmatprep.subr.bf16.mxu0 0
    %678 = vmatpush1.bf16.msra.mxu0 0
    %679 = vmatprep.subr.bf16.mxu0 0
    %680 = vmatpush1.bf16.msra.mxu0 0
    %681 = vmatprep.subr.bf16.mxu0 0
    %682 = vmatpush1.bf16.msra.mxu0 0
    %683 = vmatprep.subr.bf16.mxu0 0
    %684 = vmatpush1.bf16.msra.mxu0 0
    %685 = vmatprep.subr.bf16.mxu0 0
    %686 = vmatpush1.bf16.msra.mxu0 0
    %687 = vmatprep.subr.bf16.mxu0 0
    %688 = vmatpush1.bf16.msra.mxu0 0
    %689 = vmatprep.mubr.bf16.mxu0 0
    %690 = vmatmul.mubr.bf16.gmra.mrb[0].mxu0 %v648
    %v691 = vpop.f32.mrb[0].mxu0
    %v692 = vadd.f32 0.0, %v691
    %v693 = vpop.f32.mrb[0].mxu0
    %v694 = vpop.f32.mrb[0].mxu0
    %v695 = vpop.f32.mrb[0].mxu0
    %696 = vdwg.mxu0
    %v698 = vsel %vm203, %v635, 0
    %v701 = vsel %vm207, %v634, 0
    %703 = vmatprep.subr.bf16.mxu0 0
    %704 = vmatpush1.bf16.msra.mxu0 %v701
    %705 = vmatprep.subr.bf16.mxu0 0
    %706 = vmatpush1.bf16.msra.mxu0 0
    %707 = vmatprep.subr.bf16.mxu0 0
    %708 = vmatpush1.bf16.msra.mxu0 0
    %709 = vmatprep.subr.bf16.mxu0 0
    %710 = vmatpush1.bf16.msra.mxu0 0
    %711 = vmatprep.subr.bf16.mxu0 0
    %712 = vmatpush1.bf16.msra.mxu0 0
    %713 = vmatprep.subr.bf16.mxu0 0
    %714 = vmatpush1.bf16.msra.mxu0 0
    %715 = vmatprep.subr.bf16.mxu0 0
    %716 = vmatpush1.bf16.msra.mxu0 0
    %717 = vmatprep.subr.bf16.mxu0 0
    %718 = vmatpush1.bf16.msra.mxu0 0
    %719 = vmatprep.subr.bf16.mxu0 0
    %720 = vmatpush1.bf16.msra.mxu0 0
    %721 = vmatprep.subr.bf16.mxu0 0
    %722 = vmatpush1.bf16.msra.mxu0 0
    %723 = vmatprep.subr.bf16.mxu0 0
    %724 = vmatpush1.bf16.msra.mxu0 0
    %725 = vmatprep.subr.bf16.mxu0 0
    %726 = vmatpush1.bf16.msra.mxu0 0
    %727 = vmatprep.subr.bf16.mxu0 0
    %728 = vmatpush1.bf16.msra.mxu0 0
    %729 = vmatprep.subr.bf16.mxu0 0
    %730 = vmatpush1.bf16.msra.mxu0 0
    %731 = vmatprep.subr.bf16.mxu0 0
    %732 = vmatpush1.bf16.msra.mxu0 0
    %733 = vmatprep.subr.bf16.mxu0 0
    %734 = vmatpush1.bf16.msra.mxu0 0
    %735 = vmatprep.mubr.bf16.mxu0 0
    %736 = vmatmul.mubr.bf16.gmra.mrb[0].mxu0 %v698
    %v737 = vpop.f32.mrb[0].mxu0
    %v738 = vadd.f32 %v692, %v737
    %v739 = vpop.f32.mrb[0].mxu0
    %v740 = vpop.f32.mrb[0].mxu0
    %v741 = vpop.f32.mrb[0].mxu0
    %742 = vdwg.mxu0
    %v743 = vld [vmem:[%s14] sm:$0x3]
    %v744 = vpack.c.bf16 %v530, %v530
    %vm745 = vcmask 31744
    %v747 = vsel %vm745, %v744, 0
    %vm749 = vcmask 1041408
    %v751 = vsel %vm749, %v743, 0
    %753 = vmatprep.subr.bf16.mxu0 0
    %754 = vmatpush1.bf16.msra.mxu0 %v751
    %755 = vmatprep.subr.bf16.mxu0 0
    %756 = vmatpush1.bf16.msra.mxu0 0
    %757 = vmatprep.subr.bf16.mxu0 0
    %758 = vmatpush1.bf16.msra.mxu0 0
    %759 = vmatprep.subr.bf16.mxu0 0
    %760 = vmatpush1.bf16.msra.mxu0 0
    %761 = vmatprep.subr.bf16.mxu0 0
    %762 = vmatpush1.bf16.msra.mxu0 0
    %763 = vmatprep.subr.bf16.mxu0 0
    %764 = vmatpush1.bf16.msra.mxu0 0
    %765 = vmatprep.subr.bf16.mxu0 0
    %766 = vmatpush1.bf16.msra.mxu0 0
    %767 = vmatprep.subr.bf16.mxu0 0
    %768 = vmatpush1.bf16.msra.mxu0 0
    %769 = vmatprep.subr.bf16.mxu0 0
    %770 = vmatpush1.bf16.msra.mxu0 0
    %771 = vmatprep.subr.bf16.mxu0 0
    %772 = vmatpush1.bf16.msra.mxu0 0
    %773 = vmatprep.subr.bf16.mxu0 0
    %774 = vmatpush1.bf16.msra.mxu0 0
    %775 = vmatprep.subr.bf16.mxu0 0
    %776 = vmatpush1.bf16.msra.mxu0 0
    %777 = vmatprep.subr.bf16.mxu0 0
    %778 = vmatpush1.bf16.msra.mxu0 0
    %779 = vmatprep.subr.bf16.mxu0 0
    %780 = vmatpush1.bf16.msra.mxu0 0
    %781 = vmatprep.subr.bf16.mxu0 0
    %782 = vmatpush1.bf16.msra.mxu0 0
    %783 = vmatprep.subr.bf16.mxu0 0
    %784 = vmatpush1.bf16.msra.mxu0 0
    %785 = vmatprep.mubr.bf16.mxu0 0
    %786 = vmatmul.mubr.bf16.gmra.mrb[0].mxu0 %v747
    %v787 = vpop.f32.mrb[0].mxu0
    %v788 = vadd.f32 0.0, %v787
    %v789 = vpop.f32.mrb[0].mxu0
    %v790 = vpop.f32.mrb[0].mxu0
    %v791 = vpop.f32.mrb[0].mxu0
    %792 = vdwg.mxu0
    %v793 = vadd.f32 %v738, %v788
    %v794 = vld [vmem:[%s15] sm:$0x3]
    %v795 = vpack.c.bf16 %v633, %v633
    %v797 = vsel %vm745, %v795, 0
    %v800 = vsel %vm749, %v794, 0
    %802 = vmatprep.subr.bf16.mxu0 0
    %803 = vmatpush1.bf16.msra.mxu0 %v800
    %804 = vmatprep.subr.bf16.mxu0 0
    %805 = vmatpush1.bf16.msra.mxu0 0
    %806 = vmatprep.subr.bf16.mxu0 0
    %807 = vmatpush1.bf16.msra.mxu0 0
    %808 = vmatprep.subr.bf16.mxu0 0
    %809 = vmatpush1.bf16.msra.mxu0 0
    %810 = vmatprep.subr.bf16.mxu0 0
    %811 = vmatpush1.bf16.msra.mxu0 0
    %812 = vmatprep.subr.bf16.mxu0 0
    %813 = vmatpush1.bf16.msra.mxu0 0
    %814 = vmatprep.subr.bf16.mxu0 0
    %815 = vmatpush1.bf16.msra.mxu0 0
    %816 = vmatprep.subr.bf16.mxu0 0
    %817 = vmatpush1.bf16.msra.mxu0 0
    %818 = vmatprep.subr.bf16.mxu0 0
    %819 = vmatpush1.bf16.msra.mxu0 0
    %820 = vmatprep.subr.bf16.mxu0 0
    %821 = vmatpush1.bf16.msra.mxu0 0
    %822 = vmatprep.subr.bf16.mxu0 0
    %823 = vmatpush1.bf16.msra.mxu0 0
    %824 = vmatprep.subr.bf16.mxu0 0
    %825 = vmatpush1.bf16.msra.mxu0 0
    %826 = vmatprep.subr.bf16.mxu0 0
    %827 = vmatpush1.bf16.msra.mxu0 0
    %828 = vmatprep.subr.bf16.mxu0 0
    %829 = vmatpush1.bf16.msra.mxu0 0
    %830 = vmatprep.subr.bf16.mxu0 0
    %831 = vmatpush1.bf16.msra.mxu0 0
    %832 = vmatprep.subr.bf16.mxu0 0
    %833 = vmatpush1.bf16.msra.mxu0 0
    %834 = vmatprep.mubr.bf16.mxu0 0
    %835 = vmatmul.mubr.bf16.gmra.mrb[0].mxu0 %v797
    %v836 = vpop.f32.mrb[0].mxu0
    %v837 = vadd.f32 0.0, %v836
    %v838 = vpop.f32.mrb[0].mxu0
    %v839 = vpop.f32.mrb[0].mxu0
    %v840 = vpop.f32.mrb[0].mxu0
    %841 = vdwg.mxu0
    %v842 = vadd.f32 %v793, %v837
    %v843 = vld [vmem:[%s16] sm:$0x1]
    %v845 = vlaneseq
    %v846 = vshrl.u32 %v845, 7
    %v847 = vsub.s32 0, %v846
    %v848 = vrot.slane %v843, %v847
    %v850 = vadd.f32 %v842, %v848
    %s851 = sld [smem:[#allocation9 + $0x2]]
    %vm852 = vcmp.gt.f32.partialorder %v850, 0.0
    %v853 = vstv %s851
    %v854 = vmul.f32 %v850, %v853
    %v855 = vsel %vm852, %v850, %v854
    %v856 = vld [vmem:[%s17] sm:$0xf]
    %v857 = vld [vmem:[%s17 + $0x4] sm:$0xf]
    %v858 = vld [vmem:[%s17 + $0x8] sm:$0xf]
    %v859 = vld [vmem:[%s17 + $0xc] sm:$0xf]
    %v860 = vpack.c.bf16 %v855, %v855
    %v861 = vld [vmem:[%s18] sm:$0x1]
    %v863 = vlaneseq
    %v864 = vshrl.u32 %v863, 7
    %v865 = vsub.s32 0, %v864
    %v866 = vrot.slane %v861, %v865
    %v872 = vunpack.c.l.b16 %v856
    %v873 = vunpack.c.l.b16 %v857
    %v874 = vunpack.c.l.b16 %v858
    %v875 = vunpack.c.l.b16 %v859
    %v876 = vpack.c.b16 %v873, %v872
    %v877 = vpack.c.b16 %v875, %v874
    %v881 = vsel %vm288, %v860, 0
    %883 = vmatprep.subr.bf16.mxu0 0
    %884 = vmatpush1.bf16.msra.mxu0 %v876
    %885 = vmatprep.subr.bf16.mxu0 0
    %886 = vmatpush1.bf16.msra.mxu0 %v877
    %887 = vmatprep.subr.bf16.mxu0 0
    %888 = vmatpush1.bf16.msra.mxu0 0
    %889 = vmatprep.subr.bf16.mxu0 0
    %890 = vmatpush1.bf16.msra.mxu0 0
    %891 = vmatprep.subr.bf16.mxu0 0
    %892 = vmatpush1.bf16.msra.mxu0 0
    %893 = vmatprep.subr.bf16.mxu0 0
    %894 = vmatpush1.bf16.msra.mxu0 0
    %895 = vmatprep.subr.bf16.mxu0 0
    %896 = vmatpush1.bf16.msra.mxu0 0
    %897 = vmatprep.subr.bf16.mxu0 0
    %898 = vmatpush1.bf16.msra.mxu0 0
    %899 = vmatprep.subr.bf16.mxu0 0
    %900 = vmatpush1.bf16.msra.mxu0 0
    %901 = vmatprep.subr.bf16.mxu0 0
    %902 = vmatpush1.bf16.msra.mxu0 0
    %903 = vmatprep.subr.bf16.mxu0 0
    %904 = vmatpush1.bf16.msra.mxu0 0
    %905 = vmatprep.subr.bf16.mxu0 0
    %906 = vmatpush1.bf16.msra.mxu0 0
    %907 = vmatprep.subr.bf16.mxu0 0
    %908 = vmatpush1.bf16.msra.mxu0 0
    %909 = vmatprep.subr.bf16.mxu0 0
    %910 = vmatpush1.bf16.msra.mxu0 0
    %911 = vmatprep.subr.bf16.mxu0 0
    %912 = vmatpush1.bf16.msra.mxu0 0
    %913 = vmatprep.subr.bf16.mxu0 0
    %914 = vmatpush1.bf16.msra.mxu0 0
    %915 = vmatprep.mubr.bf16.mxu0 0
    %916 = vmatmul.mubr.bf16.gmra.mrb[0].mxu0 %v881
    %v917 = vpop.f32.mrb[0].mxu0
    %v918 = vadd.f32 %v866, %v917
    %v919 = vpop.f32.mrb[0].mxu0
    %v920 = vpop.f32.mrb[0].mxu0
    %v921 = vpop.f32.mrb[0].mxu0
    %922 = vdwg.mxu0
    %s923 = sld [smem:[#allocation9 + $0x3]]
    %vm924 = vcmp.gt.f32.partialorder %v918, 0.0
    %v925 = vstv %s923
    %v926 = vmul.f32 %v918, %v925
    %v927 = vsel %vm924, %v918, %v926
    %v928 = vld [vmem:[%s19] sm:$0xf]
    %v929 = vld [vmem:[%s19 + $0x4] sm:$0xf]
    %v930 = vld [vmem:[%s19 + $0x8] sm:$0xf]
    %v931 = vld [vmem:[%s19 + $0xc] sm:$0xf]
    %v932 = vpack.c.bf16 %v927, %v927
    %v933 = vld [vmem:[%s20] sm:$0x1]
    %v935 = vlaneseq
    %v936 = vshrl.u32 %v935, 7
    %v937 = vsub.s32 0, %v936
    %v938 = vrot.slane %v933, %v937
    %v944 = vunpack.c.l.b16 %v928
    %v945 = vunpack.c.l.b16 %v929
    %v946 = vunpack.c.l.b16 %v930
    %v947 = vunpack.c.l.b16 %v931
    %v948 = vpack.c.b16 %v945, %v944
    %v949 = vpack.c.b16 %v947, %v946
    %v953 = vsel %vm288, %v932, 0
    %955 = vmatprep.subr.bf16.mxu0 0
    %956 = vmatpush1.bf16.msra.mxu0 %v948
    %957 = vmatprep.subr.bf16.mxu0 0
    %958 = vmatpush1.bf16.msra.mxu0 %v949
    %959 = vmatprep.subr.bf16.mxu0 0
    %960 = vmatpush1.bf16.msra.mxu0 0
    %961 = vmatprep.subr.bf16.mxu0 0
    %962 = vmatpush1.bf16.msra.mxu0 0
    %963 = vmatprep.subr.bf16.mxu0 0
    %964 = vmatpush1.bf16.msra.mxu0 0
    %965 = vmatprep.subr.bf16.mxu0 0
    %966 = vmatpush1.bf16.msra.mxu0 0
    %967 = vmatprep.subr.bf16.mxu0 0
    %968 = vmatpush1.bf16.msra.mxu0 0
    %969 = vmatprep.subr.bf16.mxu0 0
    %970 = vmatpush1.bf16.msra.mxu0 0
    %971 = vmatprep.subr.bf16.mxu0 0
    %972 = vmatpush1.bf16.msra.mxu0 0
    %973 = vmatprep.subr.bf16.mxu0 0
    %974 = vmatpush1.bf16.msra.mxu0 0
    %975 = vmatprep.subr.bf16.mxu0 0
    %976 = vmatpush1.bf16.msra.mxu0 0
    %977 = vmatprep.subr.bf16.mxu0 0
    %978 = vmatpush1.bf16.msra.mxu0 0
    %979 = vmatprep.subr.bf16.mxu0 0
    %980 = vmatpush1.bf16.msra.mxu0 0
    %981 = vmatprep.subr.bf16.mxu0 0
    %982 = vmatpush1.bf16.msra.mxu0 0
    %983 = vmatprep.subr.bf16.mxu0 0
    %984 = vmatpush1.bf16.msra.mxu0 0
    %985 = vmatprep.subr.bf16.mxu0 0
    %986 = vmatpush1.bf16.msra.mxu0 0
    %987 = vmatprep.mubr.bf16.mxu0 0
    %988 = vmatmul.mubr.bf16.gmra.mrb[0].mxu0 %v953
    %v989 = vpop.f32.mrb[0].mxu0
    %v990 = vadd.f32 %v938, %v989
    %v991 = vpop.f32.mrb[0].mxu0
    %v992 = vpop.f32.mrb[0].mxu0
    %v993 = vpop.f32.mrb[0].mxu0
    %994 = vdwg.mxu0
    %vm995 = vcmask 58368
    %996 = vst.msk [vmem:[#allocation13] sm:$0x3] %vm995, %v990
    %997 = vst.msk [vmem:[#allocation14] sm:$0x3] %vm995, %v399
    %999 = vrot.lane.b32.xlu0 %v399, 120
    %v1000 = vpop.permute.xlu0 %999
    %1002 = vst.msk [vmem:[#allocation16] sm:$0x3] %vm995, %v1000
    // Predicated region
    $region110: #{tpu_custom_call.1} parent=1 // pred_check
      _
    $region111: #{tpu_custom_call.1} parent=1 // pred_check_branch
      %1004 = sbr.rel (0) target = $region113
    $region112: #{tpu_custom_call.1} parent=1 // pred_region
      %s1006 = ssub.s32 32, 32
      %1007 = vsyncadd [#allocation4], %s1006
      %s1009 = sshll.u32 [#allocation13], 4
      %s1010 = int_to_ptr.vmem [resolvable:$true] %s1009
      %1012 = dma.vmem_to_hbm [thread:$0]  %s1010, 32, %s21, [#allocation4]
    $region113: #{tpu_custom_call.1} parent=1 // pred_fallthru
      _
    // Predicated region
    $region114: #{tpu_custom_call.1} parent=1 // pred_check
      _
    $region115: #{tpu_custom_call.1} parent=1 // pred_check_branch
      %1014 = sbr.rel (0) target = $region117
    $region116: #{tpu_custom_call.1} parent=1 // pred_region
      %s1016 = ssub.s32 32, 32
      %1017 = vsyncadd [#allocation15], %s1016
      %s1019 = sshll.u32 [#allocation14], 4
      %s1020 = int_to_ptr.vmem [resolvable:$true] %s1019
      %1022 = dma.vmem_to_hbm [thread:$0]  %s1020, 32, %s22, [#allocation15]
    $region117: #{tpu_custom_call.1} parent=1 // pred_fallthru
      _
    // Predicated region
    $region118: #{tpu_custom_call.1} parent=1 // pred_check
      _
    $region119: #{tpu_custom_call.1} parent=1 // pred_check_branch
      %1024 = sbr.rel (0) target = $region121
    $region120: #{tpu_custom_call.1} parent=1 // pred_region
      %s1026 = ssub.s32 32, 32
      %1027 = vsyncadd [#allocation15], %s1026
      %s1029 = sshll.u32 [#allocation16], 4
      %s1030 = int_to_ptr.vmem [resolvable:$true] %s1029
      %1032 = dma.vmem_to_hbm [thread:$0]  %s1030, 32, %s23, [#allocation15]
    $region121: #{tpu_custom_call.1} parent=1 // pred_fallthru
      _
    // Predicated region
    $region122: #{tpu_custom_call.1} parent=1 // pred_check
      _
    $region123: #{tpu_custom_call.1} parent=1 // pred_check_branch
      %1034 = sbr.rel (0) target = $region125
    $region124: #{tpu_custom_call.1} parent=1 // pred_region
      %1035 = dma.done [#allocation4], 32
    $region125: #{tpu_custom_call.1} parent=1 // pred_fallthru
      _
    // Predicated region
    $region126: #{tpu_custom_call.1} parent=1 // pred_check
      _
    $region127: #{tpu_custom_call.1} parent=1 // pred_check_branch
      %1037 = sbr.rel (0) target = $region129
    $region128: #{tpu_custom_call.1} parent=1 // pred_region
      %1038 = dma.done [#allocation15], 32
    $region129: #{tpu_custom_call.1} parent=1 // pred_fallthru
      _
    // Predicated region
    $region130: #{tpu_custom_call.1} parent=1 // pred_check
      _
    $region131: #{tpu_custom_call.1} parent=1 // pred_check_branch
      %1040 = sbr.rel (0) target = $region133
    $region132: #{tpu_custom_call.1} parent=1 // pred_region
      %1041 = dma.done [#allocation15], 32
    $region133: #{tpu_custom_call.1} parent=1 // pred_fallthru
      _
    %1042 = vsyncpa [#allocation3], 1
    %1043 = vsyncpa [#allocation7], 1
    %1044 = vsyncpa [#allocation11], 1
    %1045 = vsyncpa [#allocation4], 1
    %1046 = vsyncpa [#allocation15], 1
    %1047 = vsyncpa [#allocation5], 1

</llo_original>
